<compile_context>
chip_gen: v7x
topology: tpu7x:2x2x1
jax: 0.10.0
libtpu: 0.0.40
codegen_flags: <defaults>
</compile_context>

<pallas_src>
import jax
import jax.numpy as jnp
from jax.experimental import pallas as pl
from jax.experimental.pallas import tpu as pltpu

ATTN_WEIGHT = 3.14159        # self.attention_weight (fixed parameter value)
PHI_RATIO = 1.618
_PAD = 8                     # sublane halo used by the conv shift scratch


def _round_up(x, m):
    return ((x + m - 1) // m) * m


def _text_model_kernel(emb_ref, wet_ref, bet_ref,
                       w1_ref, b1_ref, w2_ref, b2_ref,
                       wa_ref, ba_ref, wr_ref, br_ref,
                       wfc1_ref, bfc1_ref, wfc2_ref, bfc2_ref,
                       out_ref, shift_ref, gather_ref):
    f32 = jnp.float32
    TB, L, E = emb_ref.shape
    rows = TB * L

    x = emb_ref[...].reshape(rows, E)                           # (rows, E)

    # ---- embed_transform: Linear(E -> Hp) ----
    h = jnp.dot(x, wet_ref[...], preferred_element_type=f32) + bet_ref[...]

    # per-row sequence position (for conv zero-padding at l=0 / l=L-1)
    pos = jax.lax.broadcasted_iota(jnp.int32, (TB, L, 1), 1).reshape(rows, 1)
    is_first = pos == 0
    is_last = pos == (L - 1)

    # zero the halo rows of the shift scratch once per grid step
    shift_ref[...] = jnp.zeros(shift_ref.shape, f32)

    def conv1d_relu(y, w_ref, b_ref):
        # y: (rows, Cin); w_ref: (3*Cin, Cout) with taps [l-1, l, l+1]
        cin = y.shape[1]
        shift_ref[pl.ds(_PAD, rows), pl.ds(0, cin)] = y
        y_prev = jnp.where(is_first, 0.0,
                           shift_ref[pl.ds(_PAD - 1, rows), pl.ds(0, cin)])
        y_next = jnp.where(is_last, 0.0,
                           shift_ref[pl.ds(_PAD + 1, rows), pl.ds(0, cin)])
        taps = jnp.concatenate([y_prev, y, y_next], axis=1)     # (rows, 3*Cin)
        out = jnp.dot(taps, w_ref[...], preferred_element_type=f32) + b_ref[...]
        return jnp.maximum(out, 0.0)

    c1 = conv1d_relu(h, w1_ref, b1_ref)                         # (rows, 128)
    c2 = conv1d_relu(c1, w2_ref, b2_ref)                        # (rows, 256)
    C2 = c2.shape[1]

    # ---- attention: tanh(Linear) * w, softmax over sequence positions ----
    scores = jnp.tanh(jnp.dot(c2, wa_ref[...], preferred_element_type=f32)
                      + ba_ref[...]) * ATTN_WEIGHT              # (rows, 256)
    s3 = scores.reshape(TB, L, C2)
    m = jnp.max(s3, axis=1, keepdims=True)
    e = jnp.exp(s3 - m)
    attn = (e / jnp.sum(e, axis=1, keepdims=True)).reshape(rows, C2)
    x3 = c2 * attn

    # ---- residual: Linear(256 -> 256) + skip ----
    x4 = x3 + jnp.dot(x3, wr_ref[...], preferred_element_type=f32) + br_ref[...]

    # ---- fc head: one (TB, L*256) @ (L*256, 128) matmul, ReLU, Linear ----
    gather_ref[...] = x4.reshape(TB, L, C2)
    flat = jnp.concatenate([gather_ref[:, l, :] for l in range(L)], axis=1)
    y1 = jnp.maximum(jnp.dot(flat, wfc1_ref[...], preferred_element_type=f32)
                     + bfc1_ref[...], 0.0)                      # (TB, 128)
    # TODO(synk): nn.Dropout(0.5) is identity here (eval / inference mode).
    y2 = jnp.dot(y1, wfc2_ref[...], preferred_element_type=f32) + bfc2_ref[...]
    out_ref[...] = y2.astype(out_ref.dtype)                     # (TB, NCp)


def text_model_forward(tokens, params, num_classes, *, batch_tile=None):
    """tokens: (B, L) int32 -> (B, num_classes) float32."""
    # Embedding gather stays in plain JAX (glue); the kernel does the rest.
    emb = jnp.take(params["emb_table"], tokens, axis=0)         # (B, L, E)
    B, L, E = emb.shape
    Hp = params["wet"].shape[1]
    C2 = params["wa"].shape[0]
    NCp = params["bfc2"].shape[1]

    tb = batch_tile if batch_tile is not None else min(B, 32)
    nb = int(pl.cdiv(B, tb))
    b_pad = nb * tb
    if b_pad != B:
        emb = jnp.pad(emb, ((0, b_pad - B), (0, 0), (0, 0)))

    weights = (
        params["wet"], params["bet"],
        params["w1"].reshape(-1, params["w1"].shape[-1]), params["b1"],
        params["w2"].reshape(-1, params["w2"].shape[-1]), params["b2"],
        params["wa"], params["ba"], params["wr"], params["br"],
        params["wfc1"], params["bfc1"], params["wfc2"], params["bfc2"],
    )

    def const_spec(arr):
        n = arr.ndim
        return pl.BlockSpec(arr.shape, lambda b, _n=n: (0,) * _n)

    in_specs = ([pl.BlockSpec((tb, L, E), lambda b: (b, 0, 0))]
                + [const_spec(w) for w in weights])

    out = pl.pallas_call(
        _text_model_kernel,
        out_shape=jax.ShapeDtypeStruct((b_pad, NCp), jnp.float32),
        grid_spec=pltpu.PrefetchScalarGridSpec(
            num_scalar_prefetch=0,
            grid=(nb,),
            in_specs=in_specs,
            out_specs=pl.BlockSpec((tb, NCp), lambda b: (b, 0)),
            scratch_shapes=[
                pltpu.VMEM((tb * L + 2 * _PAD, max(Hp, 128)), jnp.float32),
                pltpu.VMEM((tb, L, C2), jnp.float32),
            ]),
        compiler_params=pltpu.CompilerParams(
            dimension_semantics=("parallel",),
            vmem_limit_bytes=48 * 1024 * 1024),
    )(emb, *weights)
    return out[:B, :num_classes]


def make_params(key, vocab_size, embed_dim, num_classes, max_seq_len):
    """Deterministic synthetic parameters, pre-laid-out / zero-padded for the kernel."""
    H = int(embed_dim * PHI_RATIO)          # 51 for embed_dim=32
    Hp = _round_up(H, 128)                  # lane-aligned hidden dim
    NCp = _round_up(num_classes, 128)       # lane-aligned class dim
    L = max_seq_len
    ks = jax.random.split(key, 16)

    def nrm(k, shape, fan_in):
        return jax.random.normal(k, shape, jnp.float32) / jnp.sqrt(fan_in)

    emb_table = jax.random.normal(ks[0], (vocab_size, embed_dim), jnp.float32)
    # embed_transform (torch weight (H, E)) stored transposed + padded to (E, Hp)
    wet = jnp.zeros((embed_dim, Hp), jnp.float32).at[:, :H].set(
        nrm(ks[1], (embed_dim, H), embed_dim))
    bet = jnp.zeros((1, Hp), jnp.float32).at[:, :H].set(nrm(ks[2], (1, H), embed_dim))
    # conv1 (torch (128, H, 3)) stored taps-first (3, Hp, 128); padded rows are zero
    w1 = jnp.zeros((3, Hp, 128), jnp.float32).at[:, :H, :].set(
        nrm(ks[3], (3, H, 128), 3 * H))
    b1 = nrm(ks[4], (1, 128), 3 * H)
    # conv2 (torch (256, 128, 3)) stored taps-first (3, 128, 256)
    w2 = nrm(ks[5], (3, 128, 256), 3 * 128)
    b2 = nrm(ks[6], (1, 256), 3 * 128)
    wa = nrm(ks[7], (256, 256), 256)
    ba = nrm(ks[8], (1, 256), 256)
    wr = nrm(ks[9], (256, 256), 256)
    br = nrm(ks[10], (1, 256), 256)
    # fc1 (torch (128, 256*L), flat index c*L + l) -> (L*256, 128), flat index l*256 + c
    wfc1_torch = nrm(ks[11], (128, 256 * L), 256 * L)
    wfc1 = jnp.transpose(wfc1_torch.reshape(128, 256, L), (2, 1, 0)).reshape(L * 256, 128)
    bfc1 = nrm(ks[12], (1, 128), 256 * L)
    # fc2 (torch (num_classes, 128)) stored transposed + padded to (128, NCp)
    wfc2 = jnp.zeros((128, NCp), jnp.float32).at[:, :num_classes].set(
        nrm(ks[13], (128, num_classes), 128))
    bfc2 = jnp.zeros((1, NCp), jnp.float32).at[:, :num_classes].set(
        nrm(ks[14], (1, num_classes), 128))
    return dict(emb_table=emb_table, wet=wet, bet=bet, w1=w1, b1=b1, w2=w2,
                b2=b2, wa=wa, ba=ba, wr=wr, br=br, wfc1=wfc1, bfc1=bfc1,
                wfc2=wfc2, bfc2=bfc2)


def reference_forward(tokens, params, num_classes):
    """Pure-JAX reference mirroring the PyTorch forward (eval mode)."""
    emb = jnp.take(params["emb_table"], tokens, axis=0)         # (B, L, E)
    h = emb @ params["wet"] + params["bet"]                     # (B, L, Hp)

    def conv(y, wt, b):                                         # y: (B, L, Cin)
        y_prev = jnp.pad(y, ((0, 0), (1, 0), (0, 0)))[:, :-1]
        y_next = jnp.pad(y, ((0, 0), (0, 1), (0, 0)))[:, 1:]
        return y_prev @ wt[0] + y @ wt[1] + y_next @ wt[2] + b

    c1 = jax.nn.relu(conv(h, params["w1"], params["b1"]))
    c2 = jax.nn.relu(conv(c1, params["w2"], params["b2"]))
    scores = jnp.tanh(c2 @ params["wa"] + params["ba"]) * ATTN_WEIGHT
    attn = jax.nn.softmax(scores, axis=1)                       # over the seq dim
    x3 = c2 * attn
    x4 = x3 + (x3 @ params["wr"] + params["br"])                # (B, L, 256)
    B, L, _ = x4.shape
    flat = x4.reshape(B, L * 256)                               # flat index l*256 + c
    y1 = jax.nn.relu(flat @ params["wfc1"] + params["bfc1"])
    y2 = y1 @ params["wfc2"] + params["bfc2"]
    return y2[:, :num_classes]


if __name__ == "__main__":
    vocab_size, embed_dim, num_classes, max_seq_len = 50, 32, 5, 8
    batch = 2

    key = jax.random.PRNGKey(0)
    kp, kt = jax.random.split(key)
    params = make_params(kp, vocab_size, embed_dim, num_classes, max_seq_len)
    tokens = jax.random.randint(kt, (batch, max_seq_len), 0, vocab_size,
                                dtype=jnp.int32)

    out = jax.block_until_ready(text_model_forward(tokens, params, num_classes))
    ref = jax.block_until_ready(reference_forward(tokens, params, num_classes))
    assert out.shape == (batch, num_classes)
    assert bool(jnp.allclose(out, ref, atol=2e-2, rtol=2e-2)), (out, ref)

    print("KERNEL_OK")
</pallas_src>

<mosaic_0001>
module attributes {stable_mosaic.version = 11 : i64} {
  func.func @_text_model_kernel(%arg0: i32, %arg1: memref<2x8x32xf32, #tpu.memory_space<vmem>>, %arg2: memref<32x128xf32, #tpu.memory_space<vmem>>, %arg3: memref<1x128xf32, #tpu.memory_space<vmem>>, %arg4: memref<384x128xf32, #tpu.memory_space<vmem>>, %arg5: memref<1x128xf32, #tpu.memory_space<vmem>>, %arg6: memref<384x256xf32, #tpu.memory_space<vmem>>, %arg7: memref<1x256xf32, #tpu.memory_space<vmem>>, %arg8: memref<256x256xf32, #tpu.memory_space<vmem>>, %arg9: memref<1x256xf32, #tpu.memory_space<vmem>>, %arg10: memref<256x256xf32, #tpu.memory_space<vmem>>, %arg11: memref<1x256xf32, #tpu.memory_space<vmem>>, %arg12: memref<2048x128xf32, #tpu.memory_space<vmem>>, %arg13: memref<1x128xf32, #tpu.memory_space<vmem>>, %arg14: memref<128x128xf32, #tpu.memory_space<vmem>>, %arg15: memref<1x128xf32, #tpu.memory_space<vmem>>, %arg16: memref<2x128xf32, #tpu.memory_space<vmem>>, %arg17: memref<32x128xf32, #tpu.memory_space<vmem>>, %arg18: memref<2x8x256xf32, #tpu.memory_space<vmem>>) attributes {dimension_semantics = [#tpu.dimension_semantics<parallel>], iteration_bounds = array<i64: 1>, scalar_prefetch = 0 : i64, scratch_operands = 2 : i64, tpu.core_type = #tpu.core_type<tc>, window_params = [{transform_indices = @transform_0, window_bounds = array<i64: 2, 8, 32>}, {pipeline_mode = #tpu.pipeline_mode<synchronous>, transform_indices = @transform_1, window_bounds = array<i64: 32, 128>}, {pipeline_mode = #tpu.pipeline_mode<synchronous>, transform_indices = @transform_2, window_bounds = array<i64: 1, 128>}, {pipeline_mode = #tpu.pipeline_mode<synchronous>, transform_indices = @transform_3, window_bounds = array<i64: 384, 128>}, {pipeline_mode = #tpu.pipeline_mode<synchronous>, transform_indices = @transform_4, window_bounds = array<i64: 1, 128>}, {pipeline_mode = #tpu.pipeline_mode<synchronous>, transform_indices = @transform_5, window_bounds = array<i64: 384, 256>}, {pipeline_mode = #tpu.pipeline_mode<synchronous>, transform_indices = @transform_6, window_bounds = array<i64: 1, 256>}, {pipeline_mode = #tpu.pipeline_mode<synchronous>, transform_indices = @transform_7, window_bounds = array<i64: 256, 256>}, {pipeline_mode = #tpu.pipeline_mode<synchronous>, transform_indices = @transform_8, window_bounds = array<i64: 1, 256>}, {pipeline_mode = #tpu.pipeline_mode<synchronous>, transform_indices = @transform_9, window_bounds = array<i64: 256, 256>}, {pipeline_mode = #tpu.pipeline_mode<synchronous>, transform_indices = @transform_10, window_bounds = array<i64: 1, 256>}, {pipeline_mode = #tpu.pipeline_mode<synchronous>, transform_indices = @transform_11, window_bounds = array<i64: 2048, 128>}, {pipeline_mode = #tpu.pipeline_mode<synchronous>, transform_indices = @transform_12, window_bounds = array<i64: 1, 128>}, {pipeline_mode = #tpu.pipeline_mode<synchronous>, transform_indices = @transform_13, window_bounds = array<i64: 128, 128>}, {pipeline_mode = #tpu.pipeline_mode<synchronous>, transform_indices = @transform_14, window_bounds = array<i64: 1, 128>}, {transform_indices = @transform_15, window_bounds = array<i64: 2, 128>}]} {
    %c0 = arith.constant 0 : index
    %c0_0 = arith.constant 0 : index
    %c0_1 = arith.constant 0 : index
    %0 = vector.load %arg1[%c0, %c0_0, %c0_1] : memref<2x8x32xf32, #tpu.memory_space<vmem>>, vector<2x8x32xf32>
    %1 = vector.shape_cast %0 : vector<2x8x32xf32> to vector<16x32xf32>
    %c0_2 = arith.constant 0 : index
    %c0_3 = arith.constant 0 : index
    %2 = vector.load %arg2[%c0_2, %c0_3] : memref<32x128xf32, #tpu.memory_space<vmem>>, vector<32x128xf32>
    %cst = arith.constant dense<0.000000e+00> : vector<16x128xf32>
    %3 = tpu.matmul %1, %2, %cst {dimension_numbers = #tpu.dot_dimension_numbers<[1], [0], [0], [1], [0, 0, 1, 1], [], []>} : vector<16x32xf32>, vector<32x128xf32>, vector<16x128xf32> -> vector<16x128xf32>
    %c0_4 = arith.constant 0 : index
    %c0_5 = arith.constant 0 : index
    %4 = vector.load %arg3[%c0_4, %c0_5] : memref<1x128xf32, #tpu.memory_space<vmem>>, vector<1x128xf32>
    %5 = vector.broadcast %4 : vector<1x128xf32> to vector<16x128xf32>
    %6 = arith.addf %3, %5 : vector<16x128xf32>
    %7 = tpu.iota {dimensions = array<i32: 1>} : vector<2x8x1xi32>
    %8 = vector.shape_cast %7 : vector<2x8x1xi32> to vector<16x1xi32>
    %c0_i32 = arith.constant 0 : i32
    %9 = vector.broadcast %c0_i32 : i32 to vector<16x1xi32>
    %10 = arith.cmpi eq, %8, %9 : vector<16x1xi32>
    %c7_i32 = arith.constant 7 : i32
    %11 = vector.broadcast %c7_i32 : i32 to vector<16x1xi32>
    %12 = arith.cmpi eq, %8, %11 : vector<16x1xi32>
    %cst_6 = arith.constant 0.000000e+00 : f32
    %13 = vector.broadcast %cst_6 : f32 to vector<32x128xf32>
    %c0_7 = arith.constant 0 : index
    %c0_8 = arith.constant 0 : index
    %14 = vector.load %arg17[%c0_7, %c0_8] : memref<32x128xf32, #tpu.memory_space<vmem>>, vector<32x128xf32>
    tpu.vector_store %arg17[%c0_7, %c0_8], %13 {strides = array<i32>} : memref<32x128xf32, #tpu.memory_space<vmem>>, vector<32x128xf32>,
    %c8 = arith.constant 8 : index
    %c0_9 = arith.constant 0 : index
    %15 = vector.load %arg17[%c8, %c0_9] : memref<32x128xf32, #tpu.memory_space<vmem>>, vector<16x128xf32>
    tpu.vector_store %arg17[%c8, %c0_9], %6 {strides = array<i32>} : memref<32x128xf32, #tpu.memory_space<vmem>>, vector<16x128xf32>,
    %c7 = arith.constant 7 : index
    %c0_10 = arith.constant 0 : index
    %16 = vector.load %arg17[%c7, %c0_10] : memref<32x128xf32, #tpu.memory_space<vmem>>, vector<16x128xf32>
    %cst_11 = arith.constant 0.000000e+00 : f32
    %17 = vector.shape_cast %10 : vector<16x1xi1> to vector<16x1xi1>
    %18 = vector.broadcast %17 : vector<16x1xi1> to vector<16x128xi1>
    %19 = vector.broadcast %cst_11 : f32 to vector<16x128xf32>
    %20 = arith.select %18, %19, %16 : vector<16x128xi1>, vector<16x128xf32>
    %c9 = arith.constant 9 : index
    %c0_12 = arith.constant 0 : index
    %21 = vector.load %arg17[%c9, %c0_12] : memref<32x128xf32, #tpu.memory_space<vmem>>, vector<16x128xf32>
    %cst_13 = arith.constant 0.000000e+00 : f32
    %22 = vector.shape_cast %12 : vector<16x1xi1> to vector<16x1xi1>
    %23 = vector.broadcast %22 : vector<16x1xi1> to vector<16x128xi1>
    %24 = vector.broadcast %cst_13 : f32 to vector<16x128xf32>
    %25 = arith.select %23, %24, %21 : vector<16x128xi1>, vector<16x128xf32>
    %26 = tpu.concatenate %20, %6, %25 in 1 : vector<16x128xf32>, vector<16x128xf32>, vector<16x128xf32> -> vector<16x384xf32>
    %c0_14 = arith.constant 0 : index
    %c0_15 = arith.constant 0 : index
    %27 = vector.load %arg4[%c0_14, %c0_15] : memref<384x128xf32, #tpu.memory_space<vmem>>, vector<384x128xf32>
    %cst_16 = arith.constant dense<0.000000e+00> : vector<16x128xf32>
    %28 = tpu.matmul %26, %27, %cst_16 {dimension_numbers = #tpu.dot_dimension_numbers<[1], [0], [0], [1], [0, 0, 1, 1], [], []>} : vector<16x384xf32>, vector<384x128xf32>, vector<16x128xf32> -> vector<16x128xf32>
    %c0_17 = arith.constant 0 : index
    %c0_18 = arith.constant 0 : index
    %29 = vector.load %arg5[%c0_17, %c0_18] : memref<1x128xf32, #tpu.memory_space<vmem>>, vector<1x128xf32>
    %30 = vector.broadcast %29 : vector<1x128xf32> to vector<16x128xf32>
    %31 = arith.addf %28, %30 : vector<16x128xf32>
    %cst_19 = arith.constant 0.000000e+00 : f32
    %32 = vector.broadcast %cst_19 : f32 to vector<16x128xf32>
    %33 = arith.maximumf %31, %32 : vector<16x128xf32>
    %c8_20 = arith.constant 8 : index
    %c0_21 = arith.constant 0 : index
    %34 = vector.load %arg17[%c8_20, %c0_21] : memref<32x128xf32, #tpu.memory_space<vmem>>, vector<16x128xf32>
    tpu.vector_store %arg17[%c8_20, %c0_21], %33 {strides = array<i32>} : memref<32x128xf32, #tpu.memory_space<vmem>>, vector<16x128xf32>,
    %c7_22 = arith.constant 7 : index
    %c0_23 = arith.constant 0 : index
    %35 = vector.load %arg17[%c7_22, %c0_23] : memref<32x128xf32, #tpu.memory_space<vmem>>, vector<16x128xf32>
    %cst_24 = arith.constant 0.000000e+00 : f32
    %36 = vector.shape_cast %10 : vector<16x1xi1> to vector<16x1xi1>
    %37 = vector.broadcast %36 : vector<16x1xi1> to vector<16x128xi1>
    %38 = vector.broadcast %cst_24 : f32 to vector<16x128xf32>
    %39 = arith.select %37, %38, %35 : vector<16x128xi1>, vector<16x128xf32>
    %c9_25 = arith.constant 9 : index
    %c0_26 = arith.constant 0 : index
    %40 = vector.load %arg17[%c9_25, %c0_26] : memref<32x128xf32, #tpu.memory_space<vmem>>, vector<16x128xf32>
    %cst_27 = arith.constant 0.000000e+00 : f32
    %41 = vector.shape_cast %12 : vector<16x1xi1> to vector<16x1xi1>
    %42 = vector.broadcast %41 : vector<16x1xi1> to vector<16x128xi1>
    %43 = vector.broadcast %cst_27 : f32 to vector<16x128xf32>
    %44 = arith.select %42, %43, %40 : vector<16x128xi1>, vector<16x128xf32>
    %45 = tpu.concatenate %39, %33, %44 in 1 : vector<16x128xf32>, vector<16x128xf32>, vector<16x128xf32> -> vector<16x384xf32>
    %c0_28 = arith.constant 0 : index
    %c0_29 = arith.constant 0 : index
    %46 = vector.load %arg6[%c0_28, %c0_29] : memref<384x256xf32, #tpu.memory_space<vmem>>, vector<384x256xf32>
    %cst_30 = arith.constant dense<0.000000e+00> : vector<16x256xf32>
    %47 = tpu.matmul %45, %46, %cst_30 {dimension_numbers = #tpu.dot_dimension_numbers<[1], [0], [0], [1], [0, 0, 1, 1], [], []>} : vector<16x384xf32>, vector<384x256xf32>, vector<16x256xf32> -> vector<16x256xf32>
    %c0_31 = arith.constant 0 : index
    %c0_32 = arith.constant 0 : index
    %48 = vector.load %arg7[%c0_31, %c0_32] : memref<1x256xf32, #tpu.memory_space<vmem>>, vector<1x256xf32>
    %49 = vector.broadcast %48 : vector<1x256xf32> to vector<16x256xf32>
    %50 = arith.addf %47, %49 : vector<16x256xf32>
    %cst_33 = arith.constant 0.000000e+00 : f32
    %51 = vector.broadcast %cst_33 : f32 to vector<16x256xf32>
    %52 = arith.maximumf %50, %51 : vector<16x256xf32>
    %c0_34 = arith.constant 0 : index
    %c0_35 = arith.constant 0 : index
    %53 = vector.load %arg8[%c0_34, %c0_35] : memref<256x256xf32, #tpu.memory_space<vmem>>, vector<256x256xf32>
    %cst_36 = arith.constant dense<0.000000e+00> : vector<16x256xf32>
    %54 = tpu.matmul %52, %53, %cst_36 {dimension_numbers = #tpu.dot_dimension_numbers<[1], [0], [0], [1], [0, 0, 1, 1], [], []>} : vector<16x256xf32>, vector<256x256xf32>, vector<16x256xf32> -> vector<16x256xf32>
    %c0_37 = arith.constant 0 : index
    %c0_38 = arith.constant 0 : index
    %55 = vector.load %arg9[%c0_37, %c0_38] : memref<1x256xf32, #tpu.memory_space<vmem>>, vector<1x256xf32>
    %56 = vector.broadcast %55 : vector<1x256xf32> to vector<16x256xf32>
    %57 = arith.addf %54, %56 : vector<16x256xf32>
    %58 = math.tanh %57 : vector<16x256xf32>
    %cst_39 = arith.constant 3.141590e+00 : f32
    %59 = vector.broadcast %cst_39 : f32 to vector<16x256xf32>
    %60 = arith.mulf %58, %59 : vector<16x256xf32>
    %61 = vector.shape_cast %60 : vector<16x256xf32> to vector<2x8x256xf32>
    %cst_40 = arith.constant dense<0xFF800000> : vector<2x256xf32>
    %62 = vector.multi_reduction <maximumf>, %61, %cst_40 [1] : vector<2x8x256xf32> to vector<2x256xf32>
    %63 = vector.shape_cast %62 : vector<2x256xf32> to vector<2x1x256xf32>
    %64 = vector.broadcast %63 : vector<2x1x256xf32> to vector<2x8x256xf32>
    %65 = arith.subf %61, %64 : vector<2x8x256xf32>
    %66 = math.exp %65 : vector<2x8x256xf32>
    %cst_41 = arith.constant dense<0.000000e+00> : vector<2x256xf32>
    %67 = vector.multi_reduction <add>, %66, %cst_41 [1] : vector<2x8x256xf32> to vector<2x256xf32>
    %68 = vector.shape_cast %67 : vector<2x256xf32> to vector<2x1x256xf32>
    %69 = vector.broadcast %68 : vector<2x1x256xf32> to vector<2x8x256xf32>
    %70 = arith.divf %66, %69 : vector<2x8x256xf32>
    %71 = vector.shape_cast %70 : vector<2x8x256xf32> to vector<16x256xf32>
    %72 = arith.mulf %52, %71 : vector<16x256xf32>
    %c0_42 = arith.constant 0 : index
    %c0_43 = arith.constant 0 : index
    %73 = vector.load %arg10[%c0_42, %c0_43] : memref<256x256xf32, #tpu.memory_space<vmem>>, vector<256x256xf32>
    %cst_44 = arith.constant dense<0.000000e+00> : vector<16x256xf32>
    %74 = tpu.matmul %72, %73, %cst_44 {dimension_numbers = #tpu.dot_dimension_numbers<[1], [0], [0], [1], [0, 0, 1, 1], [], []>} : vector<16x256xf32>, vector<256x256xf32>, vector<16x256xf32> -> vector<16x256xf32>
    %75 = arith.addf %72, %74 : vector<16x256xf32>
    %c0_45 = arith.constant 0 : index
    %c0_46 = arith.constant 0 : index
    %76 = vector.load %arg11[%c0_45, %c0_46] : memref<1x256xf32, #tpu.memory_space<vmem>>, vector<1x256xf32>
    %77 = vector.broadcast %76 : vector<1x256xf32> to vector<16x256xf32>
    %78 = arith.addf %75, %77 : vector<16x256xf32>
    %79 = vector.shape_cast %78 : vector<16x256xf32> to vector<2x8x256xf32>
    %c0_47 = arith.constant 0 : index
    %c0_48 = arith.constant 0 : index
    %c0_49 = arith.constant 0 : index
    %80 = vector.load %arg18[%c0_47, %c0_48, %c0_49] : memref<2x8x256xf32, #tpu.memory_space<vmem>>, vector<2x8x256xf32>
    tpu.vector_store %arg18[%c0_47, %c0_48, %c0_49], %79 {strides = array<i32>} : memref<2x8x256xf32, #tpu.memory_space<vmem>>, vector<2x8x256xf32>,
    %c0_50 = arith.constant 0 : index
    %c0_51 = arith.constant 0 : index
    %c0_52 = arith.constant 0 : index
    %81 = vector.load %arg18[%c0_50, %c0_51, %c0_52] : memref<2x8x256xf32, #tpu.memory_space<vmem>>, vector<2x1x256xf32>
    %82 = vector.shape_cast %81 : vector<2x1x256xf32> to vector<2x256xf32>
    %c0_53 = arith.constant 0 : index
    %c1 = arith.constant 1 : index
    %c0_54 = arith.constant 0 : index
    %83 = vector.load %arg18[%c0_53, %c1, %c0_54] : memref<2x8x256xf32, #tpu.memory_space<vmem>>, vector<2x1x256xf32>
    %84 = vector.shape_cast %83 : vector<2x1x256xf32> to vector<2x256xf32>
    %c0_55 = arith.constant 0 : index
    %c2 = arith.constant 2 : index
    %c0_56 = arith.constant 0 : index
    %85 = vector.load %arg18[%c0_55, %c2, %c0_56] : memref<2x8x256xf32, #tpu.memory_space<vmem>>, vector<2x1x256xf32>
    %86 = vector.shape_cast %85 : vector<2x1x256xf32> to vector<2x256xf32>
    %c0_57 = arith.constant 0 : index
    %c3 = arith.constant 3 : index
    %c0_58 = arith.constant 0 : index
    %87 = vector.load %arg18[%c0_57, %c3, %c0_58] : memref<2x8x256xf32, #tpu.memory_space<vmem>>, vector<2x1x256xf32>
    %88 = vector.shape_cast %87 : vector<2x1x256xf32> to vector<2x256xf32>
    %c0_59 = arith.constant 0 : index
    %c4 = arith.constant 4 : index
    %c0_60 = arith.constant 0 : index
    %89 = vector.load %arg18[%c0_59, %c4, %c0_60] : memref<2x8x256xf32, #tpu.memory_space<vmem>>, vector<2x1x256xf32>
    %90 = vector.shape_cast %89 : vector<2x1x256xf32> to vector<2x256xf32>
    %c0_61 = arith.constant 0 : index
    %c5 = arith.constant 5 : index
    %c0_62 = arith.constant 0 : index
    %91 = vector.load %arg18[%c0_61, %c5, %c0_62] : memref<2x8x256xf32, #tpu.memory_space<vmem>>, vector<2x1x256xf32>
    %92 = vector.shape_cast %91 : vector<2x1x256xf32> to vector<2x256xf32>
    %c0_63 = arith.constant 0 : index
    %c6 = arith.constant 6 : index
    %c0_64 = arith.constant 0 : index
    %93 = vector.load %arg18[%c0_63, %c6, %c0_64] : memref<2x8x256xf32, #tpu.memory_space<vmem>>, vector<2x1x256xf32>
    %94 = vector.shape_cast %93 : vector<2x1x256xf32> to vector<2x256xf32>
    %c0_65 = arith.constant 0 : index
    %c7_66 = arith.constant 7 : index
    %c0_67 = arith.constant 0 : index
    %95 = vector.load %arg18[%c0_65, %c7_66, %c0_67] : memref<2x8x256xf32, #tpu.memory_space<vmem>>, vector<2x1x256xf32>
    %96 = vector.shape_cast %95 : vector<2x1x256xf32> to vector<2x256xf32>
    %97 = tpu.concatenate %82, %84, %86, %88, %90, %92, %94, %96 in 1 : vector<2x256xf32>, vector<2x256xf32>, vector<2x256xf32>, vector<2x256xf32>, vector<2x256xf32>, vector<2x256xf32>, vector<2x256xf32>, vector<2x256xf32> -> vector<2x2048xf32>
    %c0_68 = arith.constant 0 : index
    %c0_69 = arith.constant 0 : index
    %98 = vector.load %arg12[%c0_68, %c0_69] : memref<2048x128xf32, #tpu.memory_space<vmem>>, vector<2048x128xf32>
    %cst_70 = arith.constant dense<0.000000e+00> : vector<2x128xf32>
    %99 = tpu.matmul %97, %98, %cst_70 {dimension_numbers = #tpu.dot_dimension_numbers<[1], [0], [0], [1], [0, 0, 1, 1], [], []>} : vector<2x2048xf32>, vector<2048x128xf32>, vector<2x128xf32> -> vector<2x128xf32>
    %c0_71 = arith.constant 0 : index
    %c0_72 = arith.constant 0 : index
    %100 = vector.load %arg13[%c0_71, %c0_72] : memref<1x128xf32, #tpu.memory_space<vmem>>, vector<1x128xf32>
    %101 = vector.broadcast %100 : vector<1x128xf32> to vector<2x128xf32>
    %102 = arith.addf %99, %101 : vector<2x128xf32>
    %cst_73 = arith.constant 0.000000e+00 : f32
    %103 = vector.broadcast %cst_73 : f32 to vector<2x128xf32>
    %104 = arith.maximumf %102, %103 : vector<2x128xf32>
    %c0_74 = arith.constant 0 : index
    %c0_75 = arith.constant 0 : index
    %105 = vector.load %arg14[%c0_74, %c0_75] : memref<128x128xf32, #tpu.memory_space<vmem>>, vector<128x128xf32>
    %cst_76 = arith.constant dense<0.000000e+00> : vector<2x128xf32>
    %106 = tpu.matmul %104, %105, %cst_76 {dimension_numbers = #tpu.dot_dimension_numbers<[1], [0], [0], [1], [0, 0, 1, 1], [], []>} : vector<2x128xf32>, vector<128x128xf32>, vector<2x128xf32> -> vector<2x128xf32>
    %c0_77 = arith.constant 0 : index
    %c0_78 = arith.constant 0 : index
    %107 = vector.load %arg15[%c0_77, %c0_78] : memref<1x128xf32, #tpu.memory_space<vmem>>, vector<1x128xf32>
    %108 = vector.broadcast %107 : vector<1x128xf32> to vector<2x128xf32>
    %109 = arith.addf %106, %108 : vector<2x128xf32>
    %c0_79 = arith.constant 0 : index
    %c0_80 = arith.constant 0 : index
    %110 = vector.load %arg16[%c0_79, %c0_80] : memref<2x128xf32, #tpu.memory_space<vmem>>, vector<2x128xf32>
    tpu.vector_store %arg16[%c0_79, %c0_80], %109 {strides = array<i32>} : memref<2x128xf32, #tpu.memory_space<vmem>>, vector<2x128xf32>,
    return
  }
  func.func @transform_0(%arg0: i32) -> (i32, i32, i32) {
    %c0_i32 = arith.constant 0 : i32
    %c0_i32_0 = arith.constant 0 : i32
    %c0_i32_1 = arith.constant 0 : i32
    return %arg0, %c0_i32, %c0_i32_0 : i32, i32, i32
  }
  func.func @transform_1(%arg0: i32) -> (i32, i32) {
    %c0_i32 = arith.constant 0 : i32
    %c0_i32_0 = arith.constant 0 : i32
    %c0_i32_1 = arith.constant 0 : i32
    return %c0_i32, %c0_i32_0 : i32, i32
  }
  func.func @transform_2(%arg0: i32) -> (i32, i32) {
    %c0_i32 = arith.constant 0 : i32
    %c0_i32_0 = arith.constant 0 : i32
    %c0_i32_1 = arith.constant 0 : i32
    return %c0_i32, %c0_i32_0 : i32, i32
  }
  func.func @transform_3(%arg0: i32) -> (i32, i32) {
    %c0_i32 = arith.constant 0 : i32
    %c0_i32_0 = arith.constant 0 : i32
    %c0_i32_1 = arith.constant 0 : i32
    return %c0_i32, %c0_i32_0 : i32, i32
  }
  func.func @transform_4(%arg0: i32) -> (i32, i32) {
    %c0_i32 = arith.constant 0 : i32
    %c0_i32_0 = arith.constant 0 : i32
    %c0_i32_1 = arith.constant 0 : i32
    return %c0_i32, %c0_i32_0 : i32, i32
  }
  func.func @transform_5(%arg0: i32) -> (i32, i32) {
    %c0_i32 = arith.constant 0 : i32
    %c0_i32_0 = arith.constant 0 : i32
    %c0_i32_1 = arith.constant 0 : i32
    return %c0_i32, %c0_i32_0 : i32, i32
  }
  func.func @transform_6(%arg0: i32) -> (i32, i32) {
    %c0_i32 = arith.constant 0 : i32
    %c0_i32_0 = arith.constant 0 : i32
    %c0_i32_1 = arith.constant 0 : i32
    return %c0_i32, %c0_i32_0 : i32, i32
  }
  func.func @transform_7(%arg0: i32) -> (i32, i32) {
    %c0_i32 = arith.constant 0 : i32
    %c0_i32_0 = arith.constant 0 : i32
    %c0_i32_1 = arith.constant 0 : i32
    return %c0_i32, %c0_i32_0 : i32, i32
  }
  func.func @transform_8(%arg0: i32) -> (i32, i32) {
    %c0_i32 = arith.constant 0 : i32
    %c0_i32_0 = arith.constant 0 : i32
    %c0_i32_1 = arith.constant 0 : i32
    return %c0_i32, %c0_i32_0 : i32, i32
  }
  func.func @transform_9(%arg0: i32) -> (i32, i32) {
    %c0_i32 = arith.constant 0 : i32
    %c0_i32_0 = arith.constant 0 : i32
    %c0_i32_1 = arith.constant 0 : i32
    return %c0_i32, %c0_i32_0 : i32, i32
  }
  func.func @transform_10(%arg0: i32) -> (i32, i32) {
    %c0_i32 = arith.constant 0 : i32
    %c0_i32_0 = arith.constant 0 : i32
    %c0_i32_1 = arith.constant 0 : i32
    return %c0_i32, %c0_i32_0 : i32, i32
  }
  func.func @transform_11(%arg0: i32) -> (i32, i32) {
    %c0_i32 = arith.constant 0 : i32
    %c0_i32_0 = arith.constant 0 : i32
    %c0_i32_1 = arith.constant 0 : i32
    return %c0_i32, %c0_i32_0 : i32, i32
  }
  func.func @transform_12(%arg0: i32) -> (i32, i32) {
    %c0_i32 = arith.constant 0 : i32
    %c0_i32_0 = arith.constant 0 : i32
    %c0_i32_1 = arith.constant 0 : i32
    return %c0_i32, %c0_i32_0 : i32, i32
  }
  func.func @transform_13(%arg0: i32) -> (i32, i32) {
    %c0_i32 = arith.constant 0 : i32
    %c0_i32_0 = arith.constant 0 : i32
    %c0_i32_1 = arith.constant 0 : i32
    return %c0_i32, %c0_i32_0 : i32, i32
  }
  func.func @transform_14(%arg0: i32) -> (i32, i32) {
    %c0_i32 = arith.constant 0 : i32
    %c0_i32_0 = arith.constant 0 : i32
    %c0_i32_1 = arith.constant 0 : i32
    return %c0_i32, %c0_i32_0 : i32, i32
  }
  func.func @transform_15(%arg0: i32) -> (i32, i32) {
    %c0_i32 = arith.constant 0 : i32
    %c0_i32_0 = arith.constant 0 : i32
    return %arg0, %c0_i32 : i32, i32
  }
}

</mosaic_0001>

<llo_original>
// kernel: tpu_custom_call.1
$region0: #{tpu_custom_call.1}
  #allocation0 [shape = 'u32[]', space=smem, size = 0x4, offset = 0x4, fixed_abs, tag = 'smem constant byte address 0x4 - core index']
  #allocation1 [shape = 'u32[144,128]{1,0:T(1,128)}', space=vmem, size = 0x12000, scoped, tag = 'internal scratch']
  #allocation2 [shape = 'f32[32,128]{1,0:T(8,128)}', space=vmem, size = 0x4000, scoped, tag = 'scratch operand']
  #allocation3 [shape = 'f32[2,8,256]{2,1,0:T(8,128)}', space=vmem, size = 0x4000, scoped, tag = 'scratch operand']
  %s0 = inlined_call_operand.hbm [shape: f32[2,8,32], index: 0, kind: input, shape index: {}]
  %s1 = inlined_call_operand.hbm [shape: f32[32,128], index: 1, kind: input, shape index: {}]
  %s2 = inlined_call_operand.vmem [shape: f32[1,128], index: 2, kind: input, shape index: {}]
  %s3 = inlined_call_operand.hbm [shape: f32[384,128], index: 3, kind: input, shape index: {}]
  %s4 = inlined_call_operand.vmem [shape: f32[1,128], index: 4, kind: input, shape index: {}]
  %s5 = inlined_call_operand.hbm [shape: f32[384,256], index: 5, kind: input, shape index: {}]
  %s6 = inlined_call_operand.vmem [shape: f32[1,256], index: 6, kind: input, shape index: {}]
  %s7 = inlined_call_operand.hbm [shape: f32[256,256], index: 7, kind: input, shape index: {}]
  %s8 = inlined_call_operand.vmem [shape: f32[1,256], index: 8, kind: input, shape index: {}]
  %s9 = inlined_call_operand.hbm [shape: f32[256,256], index: 9, kind: input, shape index: {}]
  %s10 = inlined_call_operand.vmem [shape: f32[1,256], index: 10, kind: input, shape index: {}]
  %s11 = inlined_call_operand.hbm [shape: f32[2048,128], index: 11, kind: input, shape index: {}]
  %s12 = inlined_call_operand.vmem [shape: f32[1,128], index: 12, kind: input, shape index: {}]
  %s13 = inlined_call_operand.hbm [shape: f32[128,128], index: 13, kind: input, shape index: {}]
  %s14 = inlined_call_operand.vmem [shape: f32[1,128], index: 14, kind: input, shape index: {}]
  %s15 = inlined_call_operand.hbm [shape: f32[2,128], index: 15, kind: output, shape index: {}]
  %s16 = sld [smem:[#allocation0]]
  $region102: #{tpu_custom_call.1} parent=0
    _
  %s18 = ssub.s32 1, %s16
  %s19 = scalar_select 0, %s18, %s16
  $region1: #{tpu_custom_call.1} parent=0
    #allocation4 [shape = 'u8[8192]{0}', space=vmem, size = 0x2000, scoped, tag = 'input window, operand 0, single buffered']
    #allocation5 [shape = 's32[1]{0}', space=sflag, size = 0x4, scoped, tag = 'scoped memory for tpu_custom_call.1']
    #allocation6 [shape = 's32[1]{0}', space=sflag, size = 0x4, scoped, tag = 'scoped memory for tpu_custom_call.1']
    #allocation7 [shape = 'u8[16384]{0}', space=vmem, size = 0x4000, scoped, tag = 'input window, operand 1, single buffered']
    #allocation8 [shape = 's32[1]{0}', space=sflag, size = 0x4, scoped, tag = 'scoped memory for tpu_custom_call.1']
    #allocation9 [shape = 'u8[196608]{0}', space=vmem, size = 0x30000, scoped, tag = 'input window, operand 3, single buffered']
    #allocation10 [shape = 'u8[393216]{0}', space=vmem, size = 0x60000, scoped, tag = 'input window, operand 5, single buffered']
    #allocation11 [shape = 's32[1]{0}', space=sflag, size = 0x4, scoped, tag = 'scoped memory for tpu_custom_call.1']
    #allocation12 [shape = 'u8[262144]{0}', space=vmem, size = 0x40000, scoped, tag = 'input window, operand 7, single buffered']
    #allocation13 [shape = 'u8[262144]{0}', space=vmem, size = 0x40000, scoped, tag = 'input window, operand 9, single buffered']
    #allocation14 [shape = 's32[1]{0}', space=sflag, size = 0x4, scoped, tag = 'scoped memory for tpu_custom_call.1']
    #allocation15 [shape = 'u8[1048576]{0}', space=vmem, size = 0x100000, scoped, tag = 'input window, operand 11, single buffered']
    #allocation16 [shape = 'u8[65536]{0}', space=vmem, size = 0x10000, scoped, tag = 'input window, operand 13, single buffered']
    #allocation17 [shape = 's32[1]{0}', space=sflag, size = 0x4, scoped, tag = 'scoped memory for tpu_custom_call.1']
    #allocation18 [shape = 'u8[1024]{0}', space=vmem, size = 0x400, scoped, tag = 'output window, operand 0, single buffered']
    %20 = vsyncpa [#allocation5], 0
    %21 = vsyncpa [#allocation8], 0
    %22 = vsyncpa [#allocation11], 0
    %23 = vsyncpa [#allocation14], 0
    %24 = vsyncpa [#allocation17], 0
    %25 = vsyncpa [#allocation6], 0
    // Predicated region
    $region2: #{tpu_custom_call.1} parent=1 // pred_check
      _
    $region3: #{tpu_custom_call.1} parent=1 // pred_check_branch
      %27 = sbr.rel (0) target = $region5
    $region4: #{tpu_custom_call.1} parent=1 // pred_region
      %s29 = ssub.s32 256, 256
      %30 = vsyncadd [#allocation5], %s29
      %s31 = sshll.u32 [#allocation4], 4
      %s32 = int_to_ptr.vmem [resolvable:$true] %s31
      %37 = dma.hbm_to_vmem [thread:$0]  %s0, 256, %s32, [#allocation5], 128, 128, 8
    $region5: #{tpu_custom_call.1} parent=1 // pred_fallthru
      _
    // Predicated region
    $region6: #{tpu_custom_call.1} parent=1 // pred_check
      _
    $region7: #{tpu_custom_call.1} parent=1 // pred_check_branch
      %39 = sbr.rel (0) target = $region9
    $region8: #{tpu_custom_call.1} parent=1 // pred_region
      %s41 = ssub.s32 512, 512
      %42 = vsyncadd [#allocation8], %s41
      %s43 = sshll.u32 [#allocation7], 4
      %s44 = int_to_ptr.vmem [resolvable:$true] %s43
      %49 = dma.hbm_to_vmem [thread:$0]  %s1, 512, %s44, [#allocation8], 128, 128, 8
    $region9: #{tpu_custom_call.1} parent=1 // pred_fallthru
      _
    // Predicated region
    $region10: #{tpu_custom_call.1} parent=1 // pred_check
      _
    $region11: #{tpu_custom_call.1} parent=1 // pred_check_branch
      %51 = sbr.rel (0) target = $region13
    $region12: #{tpu_custom_call.1} parent=1 // pred_region
      _
    $region13: #{tpu_custom_call.1} parent=1 // pred_fallthru
      _
    // Predicated region
    $region14: #{tpu_custom_call.1} parent=1 // pred_check
      _
    $region15: #{tpu_custom_call.1} parent=1 // pred_check_branch
      %53 = sbr.rel (0) target = $region17
    $region16: #{tpu_custom_call.1} parent=1 // pred_region
      %s55 = ssub.s32 6144, 6144
      %56 = vsyncadd [#allocation8], %s55
      %s57 = sshll.u32 [#allocation9], 4
      %s58 = int_to_ptr.vmem [resolvable:$true] %s57
      %63 = dma.hbm_to_vmem [thread:$0]  %s3, 6144, %s58, [#allocation8], 128, 128, 8
    $region17: #{tpu_custom_call.1} parent=1 // pred_fallthru
      _
    // Predicated region
    $region18: #{tpu_custom_call.1} parent=1 // pred_check
      _
    $region19: #{tpu_custom_call.1} parent=1 // pred_check_branch
      %65 = sbr.rel (0) target = $region21
    $region20: #{tpu_custom_call.1} parent=1 // pred_region
      _
    $region21: #{tpu_custom_call.1} parent=1 // pred_fallthru
      _
    // Predicated region
    $region22: #{tpu_custom_call.1} parent=1 // pred_check
      _
    $region23: #{tpu_custom_call.1} parent=1 // pred_check_branch
      %67 = sbr.rel (0) target = $region25
    $region24: #{tpu_custom_call.1} parent=1 // pred_region
      %s69 = ssub.s32 12288, 12288
      %70 = vsyncadd [#allocation11], %s69
      %s71 = sshll.u32 [#allocation10], 4
      %s72 = int_to_ptr.vmem [resolvable:$true] %s71
      %77 = dma.hbm_to_vmem [thread:$0]  %s5, 12288, %s72, [#allocation11], 256, 256, 16
    $region25: #{tpu_custom_call.1} parent=1 // pred_fallthru
      _
    // Predicated region
    $region26: #{tpu_custom_call.1} parent=1 // pred_check
      _
    $region27: #{tpu_custom_call.1} parent=1 // pred_check_branch
      %79 = sbr.rel (0) target = $region29
    $region28: #{tpu_custom_call.1} parent=1 // pred_region
      _
    $region29: #{tpu_custom_call.1} parent=1 // pred_fallthru
      _
    // Predicated region
    $region30: #{tpu_custom_call.1} parent=1 // pred_check
      _
    $region31: #{tpu_custom_call.1} parent=1 // pred_check_branch
      %81 = sbr.rel (0) target = $region33
    $region32: #{tpu_custom_call.1} parent=1 // pred_region
      %s83 = ssub.s32 8192, 8192
      %84 = vsyncadd [#allocation11], %s83
      %s85 = sshll.u32 [#allocation12], 4
      %s86 = int_to_ptr.vmem [resolvable:$true] %s85
      %91 = dma.hbm_to_vmem [thread:$0]  %s7, 8192, %s86, [#allocation11], 256, 256, 16
    $region33: #{tpu_custom_call.1} parent=1 // pred_fallthru
      _
    // Predicated region
    $region34: #{tpu_custom_call.1} parent=1 // pred_check
      _
    $region35: #{tpu_custom_call.1} parent=1 // pred_check_branch
      %93 = sbr.rel (0) target = $region37
    $region36: #{tpu_custom_call.1} parent=1 // pred_region
      _
    $region37: #{tpu_custom_call.1} parent=1 // pred_fallthru
      _
    // Predicated region
    $region38: #{tpu_custom_call.1} parent=1 // pred_check
      _
    $region39: #{tpu_custom_call.1} parent=1 // pred_check_branch
      %95 = sbr.rel (0) target = $region41
    $region40: #{tpu_custom_call.1} parent=1 // pred_region
      %s97 = ssub.s32 8192, 8192
      %98 = vsyncadd [#allocation14], %s97
      %s99 = sshll.u32 [#allocation13], 4
      %s100 = int_to_ptr.vmem [resolvable:$true] %s99
      %105 = dma.hbm_to_vmem [thread:$0]  %s9, 8192, %s100, [#allocation14], 256, 256, 16
    $region41: #{tpu_custom_call.1} parent=1 // pred_fallthru
      _
    // Predicated region
    $region42: #{tpu_custom_call.1} parent=1 // pred_check
      _
    $region43: #{tpu_custom_call.1} parent=1 // pred_check_branch
      %107 = sbr.rel (0) target = $region45
    $region44: #{tpu_custom_call.1} parent=1 // pred_region
      _
    $region45: #{tpu_custom_call.1} parent=1 // pred_fallthru
      _
    // Predicated region
    $region46: #{tpu_custom_call.1} parent=1 // pred_check
      _
    $region47: #{tpu_custom_call.1} parent=1 // pred_check_branch
      %109 = sbr.rel (0) target = $region49
    $region48: #{tpu_custom_call.1} parent=1 // pred_region
      %s111 = ssub.s32 32768, 32768
      %112 = vsyncadd [#allocation14], %s111
      %s113 = sshll.u32 [#allocation15], 4
      %s114 = int_to_ptr.vmem [resolvable:$true] %s113
      %119 = dma.hbm_to_vmem [thread:$0]  %s11, 32768, %s114, [#allocation14], 128, 128, 8
    $region49: #{tpu_custom_call.1} parent=1 // pred_fallthru
      _
    // Predicated region
    $region50: #{tpu_custom_call.1} parent=1 // pred_check
      _
    $region51: #{tpu_custom_call.1} parent=1 // pred_check_branch
      %121 = sbr.rel (0) target = $region53
    $region52: #{tpu_custom_call.1} parent=1 // pred_region
      _
    $region53: #{tpu_custom_call.1} parent=1 // pred_fallthru
      _
    // Predicated region
    $region54: #{tpu_custom_call.1} parent=1 // pred_check
      _
    $region55: #{tpu_custom_call.1} parent=1 // pred_check_branch
      %123 = sbr.rel (0) target = $region57
    $region56: #{tpu_custom_call.1} parent=1 // pred_region
      %s125 = ssub.s32 2048, 2048
      %126 = vsyncadd [#allocation17], %s125
      %s127 = sshll.u32 [#allocation16], 4
      %s128 = int_to_ptr.vmem [resolvable:$true] %s127
      %133 = dma.hbm_to_vmem [thread:$0]  %s13, 2048, %s128, [#allocation17], 128, 128, 8
    $region57: #{tpu_custom_call.1} parent=1 // pred_fallthru
      _
    // Predicated region
    $region58: #{tpu_custom_call.1} parent=1 // pred_check
      _
    $region59: #{tpu_custom_call.1} parent=1 // pred_check_branch
      %135 = sbr.rel (0) target = $region61
    $region60: #{tpu_custom_call.1} parent=1 // pred_region
      _
    $region61: #{tpu_custom_call.1} parent=1 // pred_fallthru
      _
    // Predicated region
    $region62: #{tpu_custom_call.1} parent=1 // pred_check
      _
    $region63: #{tpu_custom_call.1} parent=1 // pred_check_branch
      %137 = sbr.rel (0) target = $region65
    $region64: #{tpu_custom_call.1} parent=1 // pred_region
      %138 = dma.done [#allocation5], 256
    $region65: #{tpu_custom_call.1} parent=1 // pred_fallthru
      _
    // Predicated region
    $region66: #{tpu_custom_call.1} parent=1 // pred_check
      _
    $region67: #{tpu_custom_call.1} parent=1 // pred_check_branch
      %140 = sbr.rel (0) target = $region69
    $region68: #{tpu_custom_call.1} parent=1 // pred_region
      %141 = dma.done [#allocation8], 512
    $region69: #{tpu_custom_call.1} parent=1 // pred_fallthru
      _
    // Predicated region
    $region70: #{tpu_custom_call.1} parent=1 // pred_check
      _
    $region71: #{tpu_custom_call.1} parent=1 // pred_check_branch
      %143 = sbr.rel (0) target = $region73
    $region72: #{tpu_custom_call.1} parent=1 // pred_region
      %144 = dma.done [#allocation8], 6144
    $region73: #{tpu_custom_call.1} parent=1 // pred_fallthru
      _
    // Predicated region
    $region74: #{tpu_custom_call.1} parent=1 // pred_check
      _
    $region75: #{tpu_custom_call.1} parent=1 // pred_check_branch
      %146 = sbr.rel (0) target = $region77
    $region76: #{tpu_custom_call.1} parent=1 // pred_region
      %147 = dma.done [#allocation11], 12288
    $region77: #{tpu_custom_call.1} parent=1 // pred_fallthru
      _
    // Predicated region
    $region78: #{tpu_custom_call.1} parent=1 // pred_check
      _
    $region79: #{tpu_custom_call.1} parent=1 // pred_check_branch
      %149 = sbr.rel (0) target = $region81
    $region80: #{tpu_custom_call.1} parent=1 // pred_region
      %150 = dma.done [#allocation11], 8192
    $region81: #{tpu_custom_call.1} parent=1 // pred_fallthru
      _
    // Predicated region
    $region82: #{tpu_custom_call.1} parent=1 // pred_check
      _
    $region83: #{tpu_custom_call.1} parent=1 // pred_check_branch
      %152 = sbr.rel (0) target = $region85
    $region84: #{tpu_custom_call.1} parent=1 // pred_region
      %153 = dma.done [#allocation14], 8192
    $region85: #{tpu_custom_call.1} parent=1 // pred_fallthru
      _
    // Predicated region
    $region86: #{tpu_custom_call.1} parent=1 // pred_check
      _
    $region87: #{tpu_custom_call.1} parent=1 // pred_check_branch
      %155 = sbr.rel (0) target = $region89
    $region88: #{tpu_custom_call.1} parent=1 // pred_region
      %156 = dma.done [#allocation14], 32768
    $region89: #{tpu_custom_call.1} parent=1 // pred_fallthru
      _
    // Predicated region
    $region90: #{tpu_custom_call.1} parent=1 // pred_check
      _
    $region91: #{tpu_custom_call.1} parent=1 // pred_check_branch
      %158 = sbr.rel (0) target = $region93
    $region92: #{tpu_custom_call.1} parent=1 // pred_region
      %159 = dma.done [#allocation17], 2048
    $region93: #{tpu_custom_call.1} parent=1 // pred_fallthru
      _
    %v160 = vld [vmem:[#allocation4] sm:$0xff]
    %v161 = vld [vmem:[#allocation4 + $0x8] sm:$0xff]
    %v162 = vld [vmem:[#allocation7] sm:$0xff]
    %v163 = vld [vmem:[#allocation7 + $0x8] sm:$0xff]
    %v164 = vld [vmem:[#allocation7 + $0x10] sm:$0xff]
    %v165 = vld [vmem:[#allocation7 + $0x18] sm:$0xff]
    %v166 = vld [vmem:[%s2] sm:$0x1]
    %v168 = vlaneseq
    %v169 = vshrl.u32 %v168, 7
    %v170 = vsub.s32 0, %v169
    %v171 = vrot.slane %v166, %v170
    %vm173 = vcmask 261120
    %v175 = vsel %vm173, %v160, 0
    %v178 = vsel %vm173, %v161, 0
    %180 = vmatprep.subr.mxu0 0.0
    %181 = vmatpush1.msra.mxu0 %v162
    %182 = vmatprep.subr.mxu0 0.0
    %183 = vmatpush1.msra.mxu0 %v163
    %184 = vmatprep.subr.mxu0 0.0
    %185 = vmatpush1.msra.mxu0 %v164
    %186 = vmatprep.subr.mxu0 0.0
    %187 = vmatpush1.msra.mxu0 %v165
    %188 = vmatprep.subr.mxu0 0.0
    %189 = vmatpush1.msra.mxu0 0.0
    %190 = vmatprep.subr.mxu0 0.0
    %191 = vmatpush1.msra.mxu0 0.0
    %192 = vmatprep.subr.mxu0 0.0
    %193 = vmatpush1.msra.mxu0 0.0
    %194 = vmatprep.subr.mxu0 0.0
    %195 = vmatpush1.msra.mxu0 0.0
    %196 = vmatprep.subr.mxu0 0.0
    %197 = vmatpush1.msra.mxu0 0.0
    %198 = vmatprep.subr.mxu0 0.0
    %199 = vmatpush1.msra.mxu0 0.0
    %200 = vmatprep.subr.mxu0 0.0
    %201 = vmatpush1.msra.mxu0 0.0
    %202 = vmatprep.subr.mxu0 0.0
    %203 = vmatpush1.msra.mxu0 0.0
    %204 = vmatprep.subr.mxu0 0.0
    %205 = vmatpush1.msra.mxu0 0.0
    %206 = vmatprep.subr.mxu0 0.0
    %207 = vmatpush1.msra.mxu0 0.0
    %208 = vmatprep.subr.mxu0 0.0
    %209 = vmatpush1.msra.mxu0 0.0
    %210 = vmatprep.subr.mxu0 0.0
    %211 = vmatpush1.msra.mxu0 0.0
    %212 = vmatprep.subr.mxu0 0.0
    %213 = vmatpush1.msra.mxu0 0.0
    %214 = vmatprep.subr.mxu0 0.0
    %215 = vmatpush1.msra.mxu0 0.0
    %216 = vmatprep.subr.mxu0 0.0
    %217 = vmatpush1.msra.mxu0 0.0
    %218 = vmatprep.subr.mxu0 0.0
    %219 = vmatpush1.msra.mxu0 0.0
    %220 = vmatprep.subr.mxu0 0.0
    %221 = vmatpush1.msra.mxu0 0.0
    %222 = vmatprep.subr.mxu0 0.0
    %223 = vmatpush1.msra.mxu0 0.0
    %224 = vmatprep.subr.mxu0 0.0
    %225 = vmatpush1.msra.mxu0 0.0
    %226 = vmatprep.subr.mxu0 0.0
    %227 = vmatpush1.msra.mxu0 0.0
    %228 = vmatprep.subr.mxu0 0.0
    %229 = vmatpush1.msra.mxu0 0.0
    %230 = vmatprep.subr.mxu0 0.0
    %231 = vmatpush1.msra.mxu0 0.0
    %232 = vmatprep.subr.mxu0 0.0
    %233 = vmatpush1.msra.mxu0 0.0
    %234 = vmatprep.subr.mxu0 0.0
    %235 = vmatpush1.msra.mxu0 0.0
    %236 = vmatprep.subr.mxu0 0.0
    %237 = vmatpush1.msra.mxu0 0.0
    %238 = vmatprep.subr.mxu0 0.0
    %239 = vmatpush1.msra.mxu0 0.0
    %240 = vmatprep.subr.mxu0 0.0
    %241 = vmatpush1.msra.mxu0 0.0
    %242 = vmatprep.subr.mxu0 0.0
    %243 = vmatpush1.msra.mxu0 0.0
    %244 = vmatprep.mubr.f32.mxu0 0.0
    %245 = vmatmul.mubr.f32.gmra.mrb[0].mxu0 %v175
    %v246 = vpop.f32.mrb[0].mxu0
    %v247 = vadd.f32 %v171, %v246
    %v248 = vpop.f32.mrb[0].mxu0
    %249 = vmatprep.mubr.f32.mxu0 0.0
    %250 = vmatmul.mubr.f32.gmra.mrb[0].mxu0 %v178
    %v251 = vpop.f32.mrb[0].mxu0
    %v252 = vadd.f32 %v171, %v251
    %v253 = vpop.f32.mrb[0].mxu0
    %254 = vdwg.mxu0
    %v255 = vlaneseq
    %v256 = vshrl.u32 %v255, 7
    %vm257 = vcmp.eq.s32.totalorder %v256, 0
    %vm258 = vcmp.eq.s32.totalorder %v256, 7
    %259 = vst [vmem:[#allocation2] sm:$0xff] 0.0
    %260 = vst [vmem:[#allocation2 + $0x8] sm:$0xff] 0.0
    %261 = vst [vmem:[#allocation2 + $0x10] sm:$0xff] 0.0
    %262 = vst [vmem:[#allocation2 + $0x18] sm:$0xff] 0.0
    %263 = vst [vmem:[#allocation2 + $0x8] sm:$0xff] %v247
    %264 = vst [vmem:[#allocation2 + $0x10] sm:$0xff] %v252
    %v265 = vld [vmem:[#allocation2 + $0x7] sm:$0xff]
    %v266 = vld [vmem:[#allocation2 + $0xf] sm:$0xff]
    %v267 = vsel %vm257, 1, 0
    %vm268 = vcmp.eq.s32.totalorder %v267, 1
    %v269 = vsel %vm268, 0.0, %v265
    %v270 = vsel %vm268, 0.0, %v266
    %v271 = vld [vmem:[#allocation2 + $0x9] sm:$0xff]
    %v272 = vld [vmem:[#allocation2 + $0x11] sm:$0xff]
    %v273 = vsel %vm258, 1, 0
    %vm274 = vcmp.eq.s32.totalorder %v273, 1
    %v275 = vsel %vm274, 0.0, %v271
    %v276 = vsel %vm274, 0.0, %v272
    %v277 = vld [vmem:[#allocation9] sm:$0xff]
    %v278 = vld [vmem:[#allocation9 + $0x8] sm:$0xff]
    %v279 = vld [vmem:[#allocation9 + $0x10] sm:$0xff]
    %v280 = vld [vmem:[#allocation9 + $0x18] sm:$0xff]
    %v281 = vld [vmem:[#allocation9 + $0x20] sm:$0xff]
    %v282 = vld [vmem:[#allocation9 + $0x28] sm:$0xff]
    %v283 = vld [vmem:[#allocation9 + $0x30] sm:$0xff]
    %v284 = vld [vmem:[#allocation9 + $0x38] sm:$0xff]
    %v285 = vld [vmem:[#allocation9 + $0x40] sm:$0xff]
    %v286 = vld [vmem:[#allocation9 + $0x48] sm:$0xff]
    %v287 = vld [vmem:[#allocation9 + $0x50] sm:$0xff]
    %v288 = vld [vmem:[#allocation9 + $0x58] sm:$0xff]
    %v289 = vld [vmem:[#allocation9 + $0x60] sm:$0xff]
    %v290 = vld [vmem:[#allocation9 + $0x68] sm:$0xff]
    %v291 = vld [vmem:[#allocation9 + $0x70] sm:$0xff]
    %v292 = vld [vmem:[#allocation9 + $0x78] sm:$0xff]
    %v293 = vld [vmem:[#allocation9 + $0x80] sm:$0xff]
    %v294 = vld [vmem:[#allocation9 + $0x88] sm:$0xff]
    %v295 = vld [vmem:[#allocation9 + $0x90] sm:$0xff]
    %v296 = vld [vmem:[#allocation9 + $0x98] sm:$0xff]
    %v297 = vld [vmem:[#allocation9 + $0xa0] sm:$0xff]
    %v298 = vld [vmem:[#allocation9 + $0xa8] sm:$0xff]
    %v299 = vld [vmem:[#allocation9 + $0xb0] sm:$0xff]
    %v300 = vld [vmem:[#allocation9 + $0xb8] sm:$0xff]
    %v301 = vld [vmem:[#allocation9 + $0xc0] sm:$0xff]
    %v302 = vld [vmem:[#allocation9 + $0xc8] sm:$0xff]
    %v303 = vld [vmem:[#allocation9 + $0xd0] sm:$0xff]
    %v304 = vld [vmem:[#allocation9 + $0xd8] sm:$0xff]
    %v305 = vld [vmem:[#allocation9 + $0xe0] sm:$0xff]
    %v306 = vld [vmem:[#allocation9 + $0xe8] sm:$0xff]
    %v307 = vld [vmem:[#allocation9 + $0xf0] sm:$0xff]
    %v308 = vld [vmem:[#allocation9 + $0xf8] sm:$0xff]
    %v309 = vld [vmem:[#allocation9 + $0x100] sm:$0xff]
    %v310 = vld [vmem:[#allocation9 + $0x108] sm:$0xff]
    %v311 = vld [vmem:[#allocation9 + $0x110] sm:$0xff]
    %v312 = vld [vmem:[#allocation9 + $0x118] sm:$0xff]
    %v313 = vld [vmem:[#allocation9 + $0x120] sm:$0xff]
    %v314 = vld [vmem:[#allocation9 + $0x128] sm:$0xff]
    %v315 = vld [vmem:[#allocation9 + $0x130] sm:$0xff]
    %v316 = vld [vmem:[#allocation9 + $0x138] sm:$0xff]
    %v317 = vld [vmem:[#allocation9 + $0x140] sm:$0xff]
    %v318 = vld [vmem:[#allocation9 + $0x148] sm:$0xff]
    %v319 = vld [vmem:[#allocation9 + $0x150] sm:$0xff]
    %v320 = vld [vmem:[#allocation9 + $0x158] sm:$0xff]
    %v321 = vld [vmem:[#allocation9 + $0x160] sm:$0xff]
    %v322 = vld [vmem:[#allocation9 + $0x168] sm:$0xff]
    %v323 = vld [vmem:[#allocation9 + $0x170] sm:$0xff]
    %v324 = vld [vmem:[#allocation9 + $0x178] sm:$0xff]
    %v325 = vld [vmem:[%s4] sm:$0x1]
    %v327 = vlaneseq
    %v328 = vshrl.u32 %v327, 7
    %v329 = vsub.s32 0, %v328
    %v330 = vrot.slane %v325, %v329
    %332 = vmatprep.subr.mxu0 0.0
    %333 = vmatpush1.msra.mxu0 %v277
    %334 = vmatprep.subr.mxu0 0.0
    %335 = vmatpush1.msra.mxu0 %v278
    %336 = vmatprep.subr.mxu0 0.0
    %337 = vmatpush1.msra.mxu0 %v279
    %338 = vmatprep.subr.mxu0 0.0
    %339 = vmatpush1.msra.mxu0 %v280
    %340 = vmatprep.subr.mxu0 0.0
    %341 = vmatpush1.msra.mxu0 %v281
    %342 = vmatprep.subr.mxu0 0.0
    %343 = vmatpush1.msra.mxu0 %v282
    %344 = vmatprep.subr.mxu0 0.0
    %345 = vmatpush1.msra.mxu0 %v283
    %346 = vmatprep.subr.mxu0 0.0
    %347 = vmatpush1.msra.mxu0 %v284
    %348 = vmatprep.subr.mxu0 0.0
    %349 = vmatpush1.msra.mxu0 %v285
    %350 = vmatprep.subr.mxu0 0.0
    %351 = vmatpush1.msra.mxu0 %v286
    %352 = vmatprep.subr.mxu0 0.0
    %353 = vmatpush1.msra.mxu0 %v287
    %354 = vmatprep.subr.mxu0 0.0
    %355 = vmatpush1.msra.mxu0 %v288
    %356 = vmatprep.subr.mxu0 0.0
    %357 = vmatpush1.msra.mxu0 %v289
    %358 = vmatprep.subr.mxu0 0.0
    %359 = vmatpush1.msra.mxu0 %v290
    %360 = vmatprep.subr.mxu0 0.0
    %361 = vmatpush1.msra.mxu0 %v291
    %362 = vmatprep.subr.mxu0 0.0
    %363 = vmatpush1.msra.mxu0 %v292
    %364 = vmatprep.subr.mxu0 0.0
    %365 = vmatpush1.msra.mxu0 %v293
    %366 = vmatprep.subr.mxu0 0.0
    %367 = vmatpush1.msra.mxu0 %v294
    %368 = vmatprep.subr.mxu0 0.0
    %369 = vmatpush1.msra.mxu0 %v295
    %370 = vmatprep.subr.mxu0 0.0
    %371 = vmatpush1.msra.mxu0 %v296
    %372 = vmatprep.subr.mxu0 0.0
    %373 = vmatpush1.msra.mxu0 %v297
    %374 = vmatprep.subr.mxu0 0.0
    %375 = vmatpush1.msra.mxu0 %v298
    %376 = vmatprep.subr.mxu0 0.0
    %377 = vmatpush1.msra.mxu0 %v299
    %378 = vmatprep.subr.mxu0 0.0
    %379 = vmatpush1.msra.mxu0 %v300
    %380 = vmatprep.subr.mxu0 0.0
    %381 = vmatpush1.msra.mxu0 %v301
    %382 = vmatprep.subr.mxu0 0.0
    %383 = vmatpush1.msra.mxu0 %v302
    %384 = vmatprep.subr.mxu0 0.0
    %385 = vmatpush1.msra.mxu0 %v303
    %386 = vmatprep.subr.mxu0 0.0
    %387 = vmatpush1.msra.mxu0 %v304
    %388 = vmatprep.subr.mxu0 0.0
    %389 = vmatpush1.msra.mxu0 %v305
    %390 = vmatprep.subr.mxu0 0.0
    %391 = vmatpush1.msra.mxu0 %v306
    %392 = vmatprep.subr.mxu0 0.0
    %393 = vmatpush1.msra.mxu0 %v307
    %394 = vmatprep.subr.mxu0 0.0
    %395 = vmatpush1.msra.mxu0 %v308
    %396 = vmatprep.mubr.f32.mxu0 %v247
    %397 = vmatmul.mubr.f32.gmra.mrb[0].mxu0 %v269
    %v398 = vpop.f32.mrb[0].mxu0
    %v399 = vadd.f32 %v330, %v398
    %v400 = vpop.f32.mrb[0].mxu0
    %401 = vmatprep.mubr.f32.mxu0 %v252
    %402 = vmatmul.mubr.f32.gmra.mrb[0].mxu0 %v270
    %v403 = vpop.f32.mrb[0].mxu0
    %v404 = vadd.f32 %v330, %v403
    %v405 = vpop.f32.mrb[0].mxu0
    %406 = vdwg.mxu0
    %407 = vmatprep.subr.mxu0 0.0
    %408 = vmatpush1.msra.mxu0 %v309
    %409 = vmatprep.subr.mxu0 0.0
    %410 = vmatpush1.msra.mxu0 %v310
    %411 = vmatprep.subr.mxu0 0.0
    %412 = vmatpush1.msra.mxu0 %v311
    %413 = vmatprep.subr.mxu0 0.0
    %414 = vmatpush1.msra.mxu0 %v312
    %415 = vmatprep.subr.mxu0 0.0
    %416 = vmatpush1.msra.mxu0 %v313
    %417 = vmatprep.subr.mxu0 0.0
    %418 = vmatpush1.msra.mxu0 %v314
    %419 = vmatprep.subr.mxu0 0.0
    %420 = vmatpush1.msra.mxu0 %v315
    %421 = vmatprep.subr.mxu0 0.0
    %422 = vmatpush1.msra.mxu0 %v316
    %423 = vmatprep.subr.mxu0 0.0
    %424 = vmatpush1.msra.mxu0 %v317
    %425 = vmatprep.subr.mxu0 0.0
    %426 = vmatpush1.msra.mxu0 %v318
    %427 = vmatprep.subr.mxu0 0.0
    %428 = vmatpush1.msra.mxu0 %v319
    %429 = vmatprep.subr.mxu0 0.0
    %430 = vmatpush1.msra.mxu0 %v320
    %431 = vmatprep.subr.mxu0 0.0
    %432 = vmatpush1.msra.mxu0 %v321
    %433 = vmatprep.subr.mxu0 0.0
    %434 = vmatpush1.msra.mxu0 %v322
    %435 = vmatprep.subr.mxu0 0.0
    %436 = vmatpush1.msra.mxu0 %v323
    %437 = vmatprep.subr.mxu0 0.0
    %438 = vmatpush1.msra.mxu0 %v324
    %439 = vmatprep.subr.mxu0 0.0
    %440 = vmatpush1.msra.mxu0 0.0
    %441 = vmatprep.subr.mxu0 0.0
    %442 = vmatpush1.msra.mxu0 0.0
    %443 = vmatprep.subr.mxu0 0.0
    %444 = vmatpush1.msra.mxu0 0.0
    %445 = vmatprep.subr.mxu0 0.0
    %446 = vmatpush1.msra.mxu0 0.0
    %447 = vmatprep.subr.mxu0 0.0
    %448 = vmatpush1.msra.mxu0 0.0
    %449 = vmatprep.subr.mxu0 0.0
    %450 = vmatpush1.msra.mxu0 0.0
    %451 = vmatprep.subr.mxu0 0.0
    %452 = vmatpush1.msra.mxu0 0.0
    %453 = vmatprep.subr.mxu0 0.0
    %454 = vmatpush1.msra.mxu0 0.0
    %455 = vmatprep.subr.mxu0 0.0
    %456 = vmatpush1.msra.mxu0 0.0
    %457 = vmatprep.subr.mxu0 0.0
    %458 = vmatpush1.msra.mxu0 0.0
    %459 = vmatprep.subr.mxu0 0.0
    %460 = vmatpush1.msra.mxu0 0.0
    %461 = vmatprep.subr.mxu0 0.0
    %462 = vmatpush1.msra.mxu0 0.0
    %463 = vmatprep.subr.mxu0 0.0
    %464 = vmatpush1.msra.mxu0 0.0
    %465 = vmatprep.subr.mxu0 0.0
    %466 = vmatpush1.msra.mxu0 0.0
    %467 = vmatprep.subr.mxu0 0.0
    %468 = vmatpush1.msra.mxu0 0.0
    %469 = vmatprep.subr.mxu0 0.0
    %470 = vmatpush1.msra.mxu0 0.0
    %471 = vmatprep.mubr.f32.mxu0 0.0
    %472 = vmatmul.mubr.f32.gmra.mrb[0].mxu0 %v275
    %v473 = vpop.f32.mrb[0].mxu0
    %v474 = vadd.f32 %v399, %v473
    %v475 = vpop.f32.mrb[0].mxu0
    %476 = vmatprep.mubr.f32.mxu0 0.0
    %477 = vmatmul.mubr.f32.gmra.mrb[0].mxu0 %v276
    %v478 = vpop.f32.mrb[0].mxu0
    %v479 = vadd.f32 %v404, %v478
    %v480 = vpop.f32.mrb[0].mxu0
    %481 = vdwg.mxu0
    %v482 = vmax.f32 %v474, 0.0
    %v483 = vmax.f32 %v479, 0.0
    %484 = vst [vmem:[#allocation2 + $0x8] sm:$0xff] %v482
    %485 = vst [vmem:[#allocation2 + $0x10] sm:$0xff] %v483
    %v486 = vld [vmem:[#allocation2 + $0x7] sm:$0xff]
    %v487 = vld [vmem:[#allocation2 + $0xf] sm:$0xff]
    %v488 = vsel %vm268, 0.0, %v486
    %v489 = vsel %vm268, 0.0, %v487
    %v490 = vld [vmem:[#allocation2 + $0x9] sm:$0xff]
    %v491 = vld [vmem:[#allocation2 + $0x11] sm:$0xff]
    %v492 = vsel %vm274, 0.0, %v490
    %v493 = vsel %vm274, 0.0, %v491
    %v494 = vld [vmem:[#allocation10] sm:$0xff]
    %v495 = vld [vmem:[#allocation10 + $0x8] sm:$0xff]
    %v496 = vld [vmem:[#allocation10 + $0x10] sm:$0xff]
    %v497 = vld [vmem:[#allocation10 + $0x18] sm:$0xff]
    %v498 = vld [vmem:[#allocation10 + $0x20] sm:$0xff]
    %v499 = vld [vmem:[#allocation10 + $0x28] sm:$0xff]
    %v500 = vld [vmem:[#allocation10 + $0x30] sm:$0xff]
    %v501 = vld [vmem:[#allocation10 + $0x38] sm:$0xff]
    %v502 = vld [vmem:[#allocation10 + $0x40] sm:$0xff]
    %v503 = vld [vmem:[#allocation10 + $0x48] sm:$0xff]
    %v504 = vld [vmem:[#allocation10 + $0x50] sm:$0xff]
    %v505 = vld [vmem:[#allocation10 + $0x58] sm:$0xff]
    %v506 = vld [vmem:[#allocation10 + $0x60] sm:$0xff]
    %v507 = vld [vmem:[#allocation10 + $0x68] sm:$0xff]
    %v508 = vld [vmem:[#allocation10 + $0x70] sm:$0xff]
    %v509 = vld [vmem:[#allocation10 + $0x78] sm:$0xff]
    %v510 = vld [vmem:[#allocation10 + $0x80] sm:$0xff]
    %v511 = vld [vmem:[#allocation10 + $0x88] sm:$0xff]
    %v512 = vld [vmem:[#allocation10 + $0x90] sm:$0xff]
    %v513 = vld [vmem:[#allocation10 + $0x98] sm:$0xff]
    %v514 = vld [vmem:[#allocation10 + $0xa0] sm:$0xff]
    %v515 = vld [vmem:[#allocation10 + $0xa8] sm:$0xff]
    %v516 = vld [vmem:[#allocation10 + $0xb0] sm:$0xff]
    %v517 = vld [vmem:[#allocation10 + $0xb8] sm:$0xff]
    %v518 = vld [vmem:[#allocation10 + $0xc0] sm:$0xff]
    %v519 = vld [vmem:[#allocation10 + $0xc8] sm:$0xff]
    %v520 = vld [vmem:[#allocation10 + $0xd0] sm:$0xff]
    %v521 = vld [vmem:[#allocation10 + $0xd8] sm:$0xff]
    %v522 = vld [vmem:[#allocation10 + $0xe0] sm:$0xff]
    %v523 = vld [vmem:[#allocation10 + $0xe8] sm:$0xff]
    %v524 = vld [vmem:[#allocation10 + $0xf0] sm:$0xff]
    %v525 = vld [vmem:[#allocation10 + $0xf8] sm:$0xff]
    %v526 = vld [vmem:[#allocation10 + $0x100] sm:$0xff]
    %v527 = vld [vmem:[#allocation10 + $0x108] sm:$0xff]
    %v528 = vld [vmem:[#allocation10 + $0x110] sm:$0xff]
    %v529 = vld [vmem:[#allocation10 + $0x118] sm:$0xff]
    %v530 = vld [vmem:[#allocation10 + $0x120] sm:$0xff]
    %v531 = vld [vmem:[#allocation10 + $0x128] sm:$0xff]
    %v532 = vld [vmem:[#allocation10 + $0x130] sm:$0xff]
    %v533 = vld [vmem:[#allocation10 + $0x138] sm:$0xff]
    %v534 = vld [vmem:[#allocation10 + $0x140] sm:$0xff]
    %v535 = vld [vmem:[#allocation10 + $0x148] sm:$0xff]
    %v536 = vld [vmem:[#allocation10 + $0x150] sm:$0xff]
    %v537 = vld [vmem:[#allocation10 + $0x158] sm:$0xff]
    %v538 = vld [vmem:[#allocation10 + $0x160] sm:$0xff]
    %v539 = vld [vmem:[#allocation10 + $0x168] sm:$0xff]
    %v540 = vld [vmem:[#allocation10 + $0x170] sm:$0xff]
    %v541 = vld [vmem:[#allocation10 + $0x178] sm:$0xff]
    %v542 = vld [vmem:[#allocation10 + $0x180] sm:$0xff]
    %v543 = vld [vmem:[#allocation10 + $0x188] sm:$0xff]
    %v544 = vld [vmem:[#allocation10 + $0x190] sm:$0xff]
    %v545 = vld [vmem:[#allocation10 + $0x198] sm:$0xff]
    %v546 = vld [vmem:[#allocation10 + $0x1a0] sm:$0xff]
    %v547 = vld [vmem:[#allocation10 + $0x1a8] sm:$0xff]
    %v548 = vld [vmem:[#allocation10 + $0x1b0] sm:$0xff]
    %v549 = vld [vmem:[#allocation10 + $0x1b8] sm:$0xff]
    %v550 = vld [vmem:[#allocation10 + $0x1c0] sm:$0xff]
    %v551 = vld [vmem:[#allocation10 + $0x1c8] sm:$0xff]
    %v552 = vld [vmem:[#allocation10 + $0x1d0] sm:$0xff]
    %v553 = vld [vmem:[#allocation10 + $0x1d8] sm:$0xff]
    %v554 = vld [vmem:[#allocation10 + $0x1e0] sm:$0xff]
    %v555 = vld [vmem:[#allocation10 + $0x1e8] sm:$0xff]
    %v556 = vld [vmem:[#allocation10 + $0x1f0] sm:$0xff]
    %v557 = vld [vmem:[#allocation10 + $0x1f8] sm:$0xff]
    %v558 = vld [vmem:[#allocation10 + $0x200] sm:$0xff]
    %v559 = vld [vmem:[#allocation10 + $0x208] sm:$0xff]
    %v560 = vld [vmem:[#allocation10 + $0x210] sm:$0xff]
    %v561 = vld [vmem:[#allocation10 + $0x218] sm:$0xff]
    %v562 = vld [vmem:[#allocation10 + $0x220] sm:$0xff]
    %v563 = vld [vmem:[#allocation10 + $0x228] sm:$0xff]
    %v564 = vld [vmem:[#allocation10 + $0x230] sm:$0xff]
    %v565 = vld [vmem:[#allocation10 + $0x238] sm:$0xff]
    %v566 = vld [vmem:[#allocation10 + $0x240] sm:$0xff]
    %v567 = vld [vmem:[#allocation10 + $0x248] sm:$0xff]
    %v568 = vld [vmem:[#allocation10 + $0x250] sm:$0xff]
    %v569 = vld [vmem:[#allocation10 + $0x258] sm:$0xff]
    %v570 = vld [vmem:[#allocation10 + $0x260] sm:$0xff]
    %v571 = vld [vmem:[#allocation10 + $0x268] sm:$0xff]
    %v572 = vld [vmem:[#allocation10 + $0x270] sm:$0xff]
    %v573 = vld [vmem:[#allocation10 + $0x278] sm:$0xff]
    %v574 = vld [vmem:[#allocation10 + $0x280] sm:$0xff]
    %v575 = vld [vmem:[#allocation10 + $0x288] sm:$0xff]
    %v576 = vld [vmem:[#allocation10 + $0x290] sm:$0xff]
    %v577 = vld [vmem:[#allocation10 + $0x298] sm:$0xff]
    %v578 = vld [vmem:[#allocation10 + $0x2a0] sm:$0xff]
    %v579 = vld [vmem:[#allocation10 + $0x2a8] sm:$0xff]
    %v580 = vld [vmem:[#allocation10 + $0x2b0] sm:$0xff]
    %v581 = vld [vmem:[#allocation10 + $0x2b8] sm:$0xff]
    %v582 = vld [vmem:[#allocation10 + $0x2c0] sm:$0xff]
    %v583 = vld [vmem:[#allocation10 + $0x2c8] sm:$0xff]
    %v584 = vld [vmem:[#allocation10 + $0x2d0] sm:$0xff]
    %v585 = vld [vmem:[#allocation10 + $0x2d8] sm:$0xff]
    %v586 = vld [vmem:[#allocation10 + $0x2e0] sm:$0xff]
    %v587 = vld [vmem:[#allocation10 + $0x2e8] sm:$0xff]
    %v588 = vld [vmem:[#allocation10 + $0x2f0] sm:$0xff]
    %v589 = vld [vmem:[#allocation10 + $0x2f8] sm:$0xff]
    %v590 = vld [vmem:[%s6] sm:$0x3]
    %v592 = vlaneseq
    %v593 = vshrl.u32 %v592, 7
    %v594 = vsub.s32 0, %v593
    %v595 = vrot.slane %v590, %v594
    %v596 = vlaneseq
    %v597 = vshrl.u32 %v596, 7
    %v598 = vsub.s32 1, %v597
    %v599 = vrot.slane %v590, %v598
    %602 = vmatprep.subr.mxu0 %v495
    %603 = vmatpush1.msra.mxu0 %v494
    %604 = vmatprep.subr.mxu0 %v497
    %605 = vmatpush1.msra.mxu0 %v496
    %606 = vmatprep.subr.mxu0 %v499
    %607 = vmatpush1.msra.mxu0 %v498
    %608 = vmatprep.subr.mxu0 %v501
    %609 = vmatpush1.msra.mxu0 %v500
    %610 = vmatprep.subr.mxu0 %v503
    %611 = vmatpush1.msra.mxu0 %v502
    %612 = vmatprep.subr.mxu0 %v505
    %613 = vmatpush1.msra.mxu0 %v504
    %614 = vmatprep.subr.mxu0 %v507
    %615 = vmatpush1.msra.mxu0 %v506
    %616 = vmatprep.subr.mxu0 %v509
    %617 = vmatpush1.msra.mxu0 %v508
    %618 = vmatprep.subr.mxu0 %v511
    %619 = vmatpush1.msra.mxu0 %v510
    %620 = vmatprep.subr.mxu0 %v513
    %621 = vmatpush1.msra.mxu0 %v512
    %622 = vmatprep.subr.mxu0 %v515
    %623 = vmatpush1.msra.mxu0 %v514
    %624 = vmatprep.subr.mxu0 %v517
    %625 = vmatpush1.msra.mxu0 %v516
    %626 = vmatprep.subr.mxu0 %v519
    %627 = vmatpush1.msra.mxu0 %v518
    %628 = vmatprep.subr.mxu0 %v521
    %629 = vmatpush1.msra.mxu0 %v520
    %630 = vmatprep.subr.mxu0 %v523
    %631 = vmatpush1.msra.mxu0 %v522
    %632 = vmatprep.subr.mxu0 %v525
    %633 = vmatpush1.msra.mxu0 %v524
    %634 = vmatprep.subr.mxu0 %v527
    %635 = vmatpush1.msra.mxu0 %v526
    %636 = vmatprep.subr.mxu0 %v529
    %637 = vmatpush1.msra.mxu0 %v528
    %638 = vmatprep.subr.mxu0 %v531
    %639 = vmatpush1.msra.mxu0 %v530
    %640 = vmatprep.subr.mxu0 %v533
    %641 = vmatpush1.msra.mxu0 %v532
    %642 = vmatprep.subr.mxu0 %v535
    %643 = vmatpush1.msra.mxu0 %v534
    %644 = vmatprep.subr.mxu0 %v537
    %645 = vmatpush1.msra.mxu0 %v536
    %646 = vmatprep.subr.mxu0 %v539
    %647 = vmatpush1.msra.mxu0 %v538
    %648 = vmatprep.subr.mxu0 %v541
    %649 = vmatpush1.msra.mxu0 %v540
    %650 = vmatprep.subr.mxu0 %v543
    %651 = vmatpush1.msra.mxu0 %v542
    %652 = vmatprep.subr.mxu0 %v545
    %653 = vmatpush1.msra.mxu0 %v544
    %654 = vmatprep.subr.mxu0 %v547
    %655 = vmatpush1.msra.mxu0 %v546
    %656 = vmatprep.subr.mxu0 %v549
    %657 = vmatpush1.msra.mxu0 %v548
    %658 = vmatprep.subr.mxu0 %v551
    %659 = vmatpush1.msra.mxu0 %v550
    %660 = vmatprep.subr.mxu0 %v553
    %661 = vmatpush1.msra.mxu0 %v552
    %662 = vmatprep.subr.mxu0 %v555
    %663 = vmatpush1.msra.mxu0 %v554
    %664 = vmatprep.subr.mxu0 %v557
    %665 = vmatpush1.msra.mxu0 %v556
    %666 = vmatprep.mubr.f32.mxu0 %v482
    %667 = vmatmul.mubr.f32.gmra.mrb[0].mxu0 %v488
    %v668 = vpop.f32.mrb[0].mxu0
    %v669 = vadd.f32 %v595, %v668
    %v670 = vpop.f32.mrb[0].mxu0
    %v671 = vadd.f32 %v599, %v670
    %672 = vmatprep.mubr.f32.mxu0 %v483
    %673 = vmatmul.mubr.f32.gmra.mrb[0].mxu0 %v489
    %v674 = vpop.f32.mrb[0].mxu0
    %v675 = vadd.f32 %v595, %v674
    %v676 = vpop.f32.mrb[0].mxu0
    %v677 = vadd.f32 %v599, %v676
    %678 = vdwg.mxu0
    %679 = vmatprep.subr.mxu0 %v559
    %680 = vmatpush1.msra.mxu0 %v558
    %681 = vmatprep.subr.mxu0 %v561
    %682 = vmatpush1.msra.mxu0 %v560
    %683 = vmatprep.subr.mxu0 %v563
    %684 = vmatpush1.msra.mxu0 %v562
    %685 = vmatprep.subr.mxu0 %v565
    %686 = vmatpush1.msra.mxu0 %v564
    %687 = vmatprep.subr.mxu0 %v567
    %688 = vmatpush1.msra.mxu0 %v566
    %689 = vmatprep.subr.mxu0 %v569
    %690 = vmatpush1.msra.mxu0 %v568
    %691 = vmatprep.subr.mxu0 %v571
    %692 = vmatpush1.msra.mxu0 %v570
    %693 = vmatprep.subr.mxu0 %v573
    %694 = vmatpush1.msra.mxu0 %v572
    %695 = vmatprep.subr.mxu0 %v575
    %696 = vmatpush1.msra.mxu0 %v574
    %697 = vmatprep.subr.mxu0 %v577
    %698 = vmatpush1.msra.mxu0 %v576
    %699 = vmatprep.subr.mxu0 %v579
    %700 = vmatpush1.msra.mxu0 %v578
    %701 = vmatprep.subr.mxu0 %v581
    %702 = vmatpush1.msra.mxu0 %v580
    %703 = vmatprep.subr.mxu0 %v583
    %704 = vmatpush1.msra.mxu0 %v582
    %705 = vmatprep.subr.mxu0 %v585
    %706 = vmatpush1.msra.mxu0 %v584
    %707 = vmatprep.subr.mxu0 %v587
    %708 = vmatpush1.msra.mxu0 %v586
    %709 = vmatprep.subr.mxu0 %v589
    %710 = vmatpush1.msra.mxu0 %v588
    %711 = vmatprep.subr.mxu0 0.0
    %712 = vmatpush1.msra.mxu0 0.0
    %713 = vmatprep.subr.mxu0 0.0
    %714 = vmatpush1.msra.mxu0 0.0
    %715 = vmatprep.subr.mxu0 0.0
    %716 = vmatpush1.msra.mxu0 0.0
    %717 = vmatprep.subr.mxu0 0.0
    %718 = vmatpush1.msra.mxu0 0.0
    %719 = vmatprep.subr.mxu0 0.0
    %720 = vmatpush1.msra.mxu0 0.0
    %721 = vmatprep.subr.mxu0 0.0
    %722 = vmatpush1.msra.mxu0 0.0
    %723 = vmatprep.subr.mxu0 0.0
    %724 = vmatpush1.msra.mxu0 0.0
    %725 = vmatprep.subr.mxu0 0.0
    %726 = vmatpush1.msra.mxu0 0.0
    %727 = vmatprep.subr.mxu0 0.0
    %728 = vmatpush1.msra.mxu0 0.0
    %729 = vmatprep.subr.mxu0 0.0
    %730 = vmatpush1.msra.mxu0 0.0
    %731 = vmatprep.subr.mxu0 0.0
    %732 = vmatpush1.msra.mxu0 0.0
    %733 = vmatprep.subr.mxu0 0.0
    %734 = vmatpush1.msra.mxu0 0.0
    %735 = vmatprep.subr.mxu0 0.0
    %736 = vmatpush1.msra.mxu0 0.0
    %737 = vmatprep.subr.mxu0 0.0
    %738 = vmatpush1.msra.mxu0 0.0
    %739 = vmatprep.subr.mxu0 0.0
    %740 = vmatpush1.msra.mxu0 0.0
    %741 = vmatprep.subr.mxu0 0.0
    %742 = vmatpush1.msra.mxu0 0.0
    %743 = vmatprep.mubr.f32.mxu0 0.0
    %744 = vmatmul.mubr.f32.gmra.mrb[0].mxu0 %v492
    %v745 = vpop.f32.mrb[0].mxu0
    %v746 = vadd.f32 %v669, %v745
    %v747 = vpop.f32.mrb[0].mxu0
    %v748 = vadd.f32 %v671, %v747
    %749 = vmatprep.mubr.f32.mxu0 0.0
    %750 = vmatmul.mubr.f32.gmra.mrb[0].mxu0 %v493
    %v751 = vpop.f32.mrb[0].mxu0
    %v752 = vadd.f32 %v675, %v751
    %v753 = vpop.f32.mrb[0].mxu0
    %v754 = vadd.f32 %v677, %v753
    %755 = vdwg.mxu0
    %v756 = vmax.f32 %v746, 0.0
    %v757 = vmax.f32 %v748, 0.0
    %v758 = vmax.f32 %v752, 0.0
    %v759 = vmax.f32 %v754, 0.0
    %v760 = vld [vmem:[#allocation12] sm:$0xff]
    %v761 = vld [vmem:[#allocation12 + $0x8] sm:$0xff]
    %v762 = vld [vmem:[#allocation12 + $0x10] sm:$0xff]
    %v763 = vld [vmem:[#allocation12 + $0x18] sm:$0xff]
    %v764 = vld [vmem:[#allocation12 + $0x20] sm:$0xff]
    %v765 = vld [vmem:[#allocation12 + $0x28] sm:$0xff]
    %v766 = vld [vmem:[#allocation12 + $0x30] sm:$0xff]
    %v767 = vld [vmem:[#allocation12 + $0x38] sm:$0xff]
    %v768 = vld [vmem:[#allocation12 + $0x40] sm:$0xff]
    %v769 = vld [vmem:[#allocation12 + $0x48] sm:$0xff]
    %v770 = vld [vmem:[#allocation12 + $0x50] sm:$0xff]
    %v771 = vld [vmem:[#allocation12 + $0x58] sm:$0xff]
    %v772 = vld [vmem:[#allocation12 + $0x60] sm:$0xff]
    %v773 = vld [vmem:[#allocation12 + $0x68] sm:$0xff]
    %v774 = vld [vmem:[#allocation12 + $0x70] sm:$0xff]
    %v775 = vld [vmem:[#allocation12 + $0x78] sm:$0xff]
    %v776 = vld [vmem:[#allocation12 + $0x80] sm:$0xff]
    %v777 = vld [vmem:[#allocation12 + $0x88] sm:$0xff]
    %v778 = vld [vmem:[#allocation12 + $0x90] sm:$0xff]
    %v779 = vld [vmem:[#allocation12 + $0x98] sm:$0xff]
    %v780 = vld [vmem:[#allocation12 + $0xa0] sm:$0xff]
    %v781 = vld [vmem:[#allocation12 + $0xa8] sm:$0xff]
    %v782 = vld [vmem:[#allocation12 + $0xb0] sm:$0xff]
    %v783 = vld [vmem:[#allocation12 + $0xb8] sm:$0xff]
    %v784 = vld [vmem:[#allocation12 + $0xc0] sm:$0xff]
    %v785 = vld [vmem:[#allocation12 + $0xc8] sm:$0xff]
    %v786 = vld [vmem:[#allocation12 + $0xd0] sm:$0xff]
    %v787 = vld [vmem:[#allocation12 + $0xd8] sm:$0xff]
    %v788 = vld [vmem:[#allocation12 + $0xe0] sm:$0xff]
    %v789 = vld [vmem:[#allocation12 + $0xe8] sm:$0xff]
    %v790 = vld [vmem:[#allocation12 + $0xf0] sm:$0xff]
    %v791 = vld [vmem:[#allocation12 + $0xf8] sm:$0xff]
    %v792 = vld [vmem:[#allocation12 + $0x100] sm:$0xff]
    %v793 = vld [vmem:[#allocation12 + $0x108] sm:$0xff]
    %v794 = vld [vmem:[#allocation12 + $0x110] sm:$0xff]
    %v795 = vld [vmem:[#allocation12 + $0x118] sm:$0xff]
    %v796 = vld [vmem:[#allocation12 + $0x120] sm:$0xff]
    %v797 = vld [vmem:[#allocation12 + $0x128] sm:$0xff]
    %v798 = vld [vmem:[#allocation12 + $0x130] sm:$0xff]
    %v799 = vld [vmem:[#allocation12 + $0x138] sm:$0xff]
    %v800 = vld [vmem:[#allocation12 + $0x140] sm:$0xff]
    %v801 = vld [vmem:[#allocation12 + $0x148] sm:$0xff]
    %v802 = vld [vmem:[#allocation12 + $0x150] sm:$0xff]
    %v803 = vld [vmem:[#allocation12 + $0x158] sm:$0xff]
    %v804 = vld [vmem:[#allocation12 + $0x160] sm:$0xff]
    %v805 = vld [vmem:[#allocation12 + $0x168] sm:$0xff]
    %v806 = vld [vmem:[#allocation12 + $0x170] sm:$0xff]
    %v807 = vld [vmem:[#allocation12 + $0x178] sm:$0xff]
    %v808 = vld [vmem:[#allocation12 + $0x180] sm:$0xff]
    %v809 = vld [vmem:[#allocation12 + $0x188] sm:$0xff]
    %v810 = vld [vmem:[#allocation12 + $0x190] sm:$0xff]
    %v811 = vld [vmem:[#allocation12 + $0x198] sm:$0xff]
    %v812 = vld [vmem:[#allocation12 + $0x1a0] sm:$0xff]
    %v813 = vld [vmem:[#allocation12 + $0x1a8] sm:$0xff]
    %v814 = vld [vmem:[#allocation12 + $0x1b0] sm:$0xff]
    %v815 = vld [vmem:[#allocation12 + $0x1b8] sm:$0xff]
    %v816 = vld [vmem:[#allocation12 + $0x1c0] sm:$0xff]
    %v817 = vld [vmem:[#allocation12 + $0x1c8] sm:$0xff]
    %v818 = vld [vmem:[#allocation12 + $0x1d0] sm:$0xff]
    %v819 = vld [vmem:[#allocation12 + $0x1d8] sm:$0xff]
    %v820 = vld [vmem:[#allocation12 + $0x1e0] sm:$0xff]
    %v821 = vld [vmem:[#allocation12 + $0x1e8] sm:$0xff]
    %v822 = vld [vmem:[#allocation12 + $0x1f0] sm:$0xff]
    %v823 = vld [vmem:[#allocation12 + $0x1f8] sm:$0xff]
    %v824 = vld [vmem:[%s8] sm:$0x3]
    %v826 = vlaneseq
    %v827 = vshrl.u32 %v826, 7
    %v828 = vsub.s32 0, %v827
    %v829 = vrot.slane %v824, %v828
    %v830 = vlaneseq
    %v831 = vshrl.u32 %v830, 7
    %v832 = vsub.s32 1, %v831
    %v833 = vrot.slane %v824, %v832
    %836 = vmatprep.subr.mxu0 %v761
    %837 = vmatpush1.msra.mxu0 %v760
    %838 = vmatprep.subr.mxu0 %v763
    %839 = vmatpush1.msra.mxu0 %v762
    %840 = vmatprep.subr.mxu0 %v765
    %841 = vmatpush1.msra.mxu0 %v764
    %842 = vmatprep.subr.mxu0 %v767
    %843 = vmatpush1.msra.mxu0 %v766
    %844 = vmatprep.subr.mxu0 %v769
    %845 = vmatpush1.msra.mxu0 %v768
    %846 = vmatprep.subr.mxu0 %v771
    %847 = vmatpush1.msra.mxu0 %v770
    %848 = vmatprep.subr.mxu0 %v773
    %849 = vmatpush1.msra.mxu0 %v772
    %850 = vmatprep.subr.mxu0 %v775
    %851 = vmatpush1.msra.mxu0 %v774
    %852 = vmatprep.subr.mxu0 %v777
    %853 = vmatpush1.msra.mxu0 %v776
    %854 = vmatprep.subr.mxu0 %v779
    %855 = vmatpush1.msra.mxu0 %v778
    %856 = vmatprep.subr.mxu0 %v781
    %857 = vmatpush1.msra.mxu0 %v780
    %858 = vmatprep.subr.mxu0 %v783
    %859 = vmatpush1.msra.mxu0 %v782
    %860 = vmatprep.subr.mxu0 %v785
    %861 = vmatpush1.msra.mxu0 %v784
    %862 = vmatprep.subr.mxu0 %v787
    %863 = vmatpush1.msra.mxu0 %v786
    %864 = vmatprep.subr.mxu0 %v789
    %865 = vmatpush1.msra.mxu0 %v788
    %866 = vmatprep.subr.mxu0 %v791
    %867 = vmatpush1.msra.mxu0 %v790
    %868 = vmatprep.subr.mxu0 %v793
    %869 = vmatpush1.msra.mxu0 %v792
    %870 = vmatprep.subr.mxu0 %v795
    %871 = vmatpush1.msra.mxu0 %v794
    %872 = vmatprep.subr.mxu0 %v797
    %873 = vmatpush1.msra.mxu0 %v796
    %874 = vmatprep.subr.mxu0 %v799
    %875 = vmatpush1.msra.mxu0 %v798
    %876 = vmatprep.subr.mxu0 %v801
    %877 = vmatpush1.msra.mxu0 %v800
    %878 = vmatprep.subr.mxu0 %v803
    %879 = vmatpush1.msra.mxu0 %v802
    %880 = vmatprep.subr.mxu0 %v805
    %881 = vmatpush1.msra.mxu0 %v804
    %882 = vmatprep.subr.mxu0 %v807
    %883 = vmatpush1.msra.mxu0 %v806
    %884 = vmatprep.subr.mxu0 %v809
    %885 = vmatpush1.msra.mxu0 %v808
    %886 = vmatprep.subr.mxu0 %v811
    %887 = vmatpush1.msra.mxu0 %v810
    %888 = vmatprep.subr.mxu0 %v813
    %889 = vmatpush1.msra.mxu0 %v812
    %890 = vmatprep.subr.mxu0 %v815
    %891 = vmatpush1.msra.mxu0 %v814
    %892 = vmatprep.subr.mxu0 %v817
    %893 = vmatpush1.msra.mxu0 %v816
    %894 = vmatprep.subr.mxu0 %v819
    %895 = vmatpush1.msra.mxu0 %v818
    %896 = vmatprep.subr.mxu0 %v821
    %897 = vmatpush1.msra.mxu0 %v820
    %898 = vmatprep.subr.mxu0 %v823
    %899 = vmatpush1.msra.mxu0 %v822
    %900 = vmatprep.mubr.f32.mxu0 %v757
    %901 = vmatmul.mubr.f32.gmra.mrb[0].mxu0 %v756
    %v902 = vpop.f32.mrb[0].mxu0
    %v903 = vadd.f32 %v829, %v902
    %v904 = vpop.f32.mrb[0].mxu0
    %v905 = vadd.f32 %v833, %v904
    %906 = vmatprep.mubr.f32.mxu0 %v759
    %907 = vmatmul.mubr.f32.gmra.mrb[0].mxu0 %v758
    %v908 = vpop.f32.mrb[0].mxu0
    %v909 = vadd.f32 %v829, %v908
    %v910 = vpop.f32.mrb[0].mxu0
    %v911 = vadd.f32 %v833, %v910
    %912 = vdwg.mxu0
    %v913 = vtanh.pop %v903
    %v914 = vtanh.pop %v905
    %v915 = vtanh.pop %v909
    %v916 = vtanh.pop %v911
    %v917 = vmul.f32 %v913, 3.14159
    %v918 = vmul.f32 %v914, 3.14159
    %v919 = vmul.f32 %v915, 3.14159
    %v920 = vmul.f32 %v916, 3.14159
    %v921 = vrot.slane %v917, 4
    %v922 = vmax.f32 %v917, %v921
    %v923 = vrot.slane %v922, 2
    %v924 = vmax.f32 %v922, %v923
    %v925 = vrot.slane %v924, 1
    %v926 = vmax.f32 %v924, %v925
    %v927 = vrot.slane %v918, 4
    %v928 = vmax.f32 %v918, %v927
    %v929 = vrot.slane %v928, 2
    %v930 = vmax.f32 %v928, %v929
    %v931 = vrot.slane %v930, 1
    %v932 = vmax.f32 %v930, %v931
    %v933 = vrot.slane %v919, 4
    %v934 = vmax.f32 %v919, %v933
    %v935 = vrot.slane %v934, 2
    %v936 = vmax.f32 %v934, %v935
    %v937 = vrot.slane %v936, 1
    %v938 = vmax.f32 %v936, %v937
    %v939 = vrot.slane %v920, 4
    %v940 = vmax.f32 %v920, %v939
    %v941 = vrot.slane %v940, 2
    %v942 = vmax.f32 %v940, %v941
    %v943 = vrot.slane %v942, 1
    %v944 = vmax.f32 %v942, %v943
    %v945 = vsub.f32 %v917, %v926
    %v946 = vsub.f32 %v918, %v932
    %v947 = vsub.f32 %v919, %v938
    %v948 = vsub.f32 %v920, %v944
    %v949 = vmul.f32 %v945, 1.442695
    %v950 = vpow.pop %v949
    %v951 = vmul.f32 %v946, 1.442695
    %v952 = vpow.pop %v951
    %v953 = vmul.f32 %v947, 1.442695
    %v954 = vpow.pop %v953
    %v955 = vmul.f32 %v948, 1.442695
    %v956 = vpow.pop %v955
    %v957 = vrot.slane %v950, 4
    %v958 = vadd.f32 %v950, %v957
    %v959 = vrot.slane %v958, 2
    %v960 = vadd.f32 %v958, %v959
    %v961 = vrot.slane %v960, 1
    %v962 = vadd.f32 %v960, %v961
    %v963 = vrot.slane %v952, 4
    %v964 = vadd.f32 %v952, %v963
    %v965 = vrot.slane %v964, 2
    %v966 = vadd.f32 %v964, %v965
    %v967 = vrot.slane %v966, 1
    %v968 = vadd.f32 %v966, %v967
    %v969 = vrot.slane %v954, 4
    %v970 = vadd.f32 %v954, %v969
    %v971 = vrot.slane %v970, 2
    %v972 = vadd.f32 %v970, %v971
    %v973 = vrot.slane %v972, 1
    %v974 = vadd.f32 %v972, %v973
    %v975 = vrot.slane %v956, 4
    %v976 = vadd.f32 %v956, %v975
    %v977 = vrot.slane %v976, 2
    %v978 = vadd.f32 %v976, %v977
    %v979 = vrot.slane %v978, 1
    %v980 = vadd.f32 %v978, %v979
    %v981 = vrcp.pop %v962
    %v982 = vmul.f32 %v950, %v981
    %v983 = vrcp.pop %v968
    %v984 = vmul.f32 %v952, %v983
    %v985 = vrcp.pop %v974
    %v986 = vmul.f32 %v954, %v985
    %v987 = vrcp.pop %v980
    %v988 = vmul.f32 %v956, %v987
    %v989 = vmul.f32 %v756, %v982
    %v990 = vmul.f32 %v757, %v984
    %v991 = vmul.f32 %v758, %v986
    %v992 = vmul.f32 %v759, %v988
    %v993 = vld [vmem:[#allocation13] sm:$0xff]
    %v994 = vld [vmem:[#allocation13 + $0x8] sm:$0xff]
    %v995 = vld [vmem:[#allocation13 + $0x10] sm:$0xff]
    %v996 = vld [vmem:[#allocation13 + $0x18] sm:$0xff]
    %v997 = vld [vmem:[#allocation13 + $0x20] sm:$0xff]
    %v998 = vld [vmem:[#allocation13 + $0x28] sm:$0xff]
    %v999 = vld [vmem:[#allocation13 + $0x30] sm:$0xff]
    %v1000 = vld [vmem:[#allocation13 + $0x38] sm:$0xff]
    %v1001 = vld [vmem:[#allocation13 + $0x40] sm:$0xff]
    %v1002 = vld [vmem:[#allocation13 + $0x48] sm:$0xff]
    %v1003 = vld [vmem:[#allocation13 + $0x50] sm:$0xff]
    %v1004 = vld [vmem:[#allocation13 + $0x58] sm:$0xff]
    %v1005 = vld [vmem:[#allocation13 + $0x60] sm:$0xff]
    %v1006 = vld [vmem:[#allocation13 + $0x68] sm:$0xff]
    %v1007 = vld [vmem:[#allocation13 + $0x70] sm:$0xff]
    %v1008 = vld [vmem:[#allocation13 + $0x78] sm:$0xff]
    %v1009 = vld [vmem:[#allocation13 + $0x80] sm:$0xff]
    %v1010 = vld [vmem:[#allocation13 + $0x88] sm:$0xff]
    %v1011 = vld [vmem:[#allocation13 + $0x90] sm:$0xff]
    %v1012 = vld [vmem:[#allocation13 + $0x98] sm:$0xff]
    %v1013 = vld [vmem:[#allocation13 + $0xa0] sm:$0xff]
    %v1014 = vld [vmem:[#allocation13 + $0xa8] sm:$0xff]
    %v1015 = vld [vmem:[#allocation13 + $0xb0] sm:$0xff]
    %v1016 = vld [vmem:[#allocation13 + $0xb8] sm:$0xff]
    %v1017 = vld [vmem:[#allocation13 + $0xc0] sm:$0xff]
    %v1018 = vld [vmem:[#allocation13 + $0xc8] sm:$0xff]
    %v1019 = vld [vmem:[#allocation13 + $0xd0] sm:$0xff]
    %v1020 = vld [vmem:[#allocation13 + $0xd8] sm:$0xff]
    %v1021 = vld [vmem:[#allocation13 + $0xe0] sm:$0xff]
    %v1022 = vld [vmem:[#allocation13 + $0xe8] sm:$0xff]
    %v1023 = vld [vmem:[#allocation13 + $0xf0] sm:$0xff]
    %v1024 = vld [vmem:[#allocation13 + $0xf8] sm:$0xff]
    %v1025 = vld [vmem:[#allocation13 + $0x100] sm:$0xff]
    %v1026 = vld [vmem:[#allocation13 + $0x108] sm:$0xff]
    %v1027 = vld [vmem:[#allocation13 + $0x110] sm:$0xff]
    %v1028 = vld [vmem:[#allocation13 + $0x118] sm:$0xff]
    %v1029 = vld [vmem:[#allocation13 + $0x120] sm:$0xff]
    %v1030 = vld [vmem:[#allocation13 + $0x128] sm:$0xff]
    %v1031 = vld [vmem:[#allocation13 + $0x130] sm:$0xff]
    %v1032 = vld [vmem:[#allocation13 + $0x138] sm:$0xff]
    %v1033 = vld [vmem:[#allocation13 + $0x140] sm:$0xff]
    %v1034 = vld [vmem:[#allocation13 + $0x148] sm:$0xff]
    %v1035 = vld [vmem:[#allocation13 + $0x150] sm:$0xff]
    %v1036 = vld [vmem:[#allocation13 + $0x158] sm:$0xff]
    %v1037 = vld [vmem:[#allocation13 + $0x160] sm:$0xff]
    %v1038 = vld [vmem:[#allocation13 + $0x168] sm:$0xff]
    %v1039 = vld [vmem:[#allocation13 + $0x170] sm:$0xff]
    %v1040 = vld [vmem:[#allocation13 + $0x178] sm:$0xff]
    %v1041 = vld [vmem:[#allocation13 + $0x180] sm:$0xff]
    %v1042 = vld [vmem:[#allocation13 + $0x188] sm:$0xff]
    %v1043 = vld [vmem:[#allocation13 + $0x190] sm:$0xff]
    %v1044 = vld [vmem:[#allocation13 + $0x198] sm:$0xff]
    %v1045 = vld [vmem:[#allocation13 + $0x1a0] sm:$0xff]
    %v1046 = vld [vmem:[#allocation13 + $0x1a8] sm:$0xff]
    %v1047 = vld [vmem:[#allocation13 + $0x1b0] sm:$0xff]
    %v1048 = vld [vmem:[#allocation13 + $0x1b8] sm:$0xff]
    %v1049 = vld [vmem:[#allocation13 + $0x1c0] sm:$0xff]
    %v1050 = vld [vmem:[#allocation13 + $0x1c8] sm:$0xff]
    %v1051 = vld [vmem:[#allocation13 + $0x1d0] sm:$0xff]
    %v1052 = vld [vmem:[#allocation13 + $0x1d8] sm:$0xff]
    %v1053 = vld [vmem:[#allocation13 + $0x1e0] sm:$0xff]
    %v1054 = vld [vmem:[#allocation13 + $0x1e8] sm:$0xff]
    %v1055 = vld [vmem:[#allocation13 + $0x1f0] sm:$0xff]
    %v1056 = vld [vmem:[#allocation13 + $0x1f8] sm:$0xff]
    %1057 = vmatprep.subr.mxu0 %v994
    %1058 = vmatpush1.msra.mxu0 %v993
    %1059 = vmatprep.subr.mxu0 %v996
    %1060 = vmatpush1.msra.mxu0 %v995
    %1061 = vmatprep.subr.mxu0 %v998
    %1062 = vmatpush1.msra.mxu0 %v997
    %1063 = vmatprep.subr.mxu0 %v1000
    %1064 = vmatpush1.msra.mxu0 %v999
    %1065 = vmatprep.subr.mxu0 %v1002
    %1066 = vmatpush1.msra.mxu0 %v1001
    %1067 = vmatprep.subr.mxu0 %v1004
    %1068 = vmatpush1.msra.mxu0 %v1003
    %1069 = vmatprep.subr.mxu0 %v1006
    %1070 = vmatpush1.msra.mxu0 %v1005
    %1071 = vmatprep.subr.mxu0 %v1008
    %1072 = vmatpush1.msra.mxu0 %v1007
    %1073 = vmatprep.subr.mxu0 %v1010
    %1074 = vmatpush1.msra.mxu0 %v1009
    %1075 = vmatprep.subr.mxu0 %v1012
    %1076 = vmatpush1.msra.mxu0 %v1011
    %1077 = vmatprep.subr.mxu0 %v1014
    %1078 = vmatpush1.msra.mxu0 %v1013
    %1079 = vmatprep.subr.mxu0 %v1016
    %1080 = vmatpush1.msra.mxu0 %v1015
    %1081 = vmatprep.subr.mxu0 %v1018
    %1082 = vmatpush1.msra.mxu0 %v1017
    %1083 = vmatprep.subr.mxu0 %v1020
    %1084 = vmatpush1.msra.mxu0 %v1019
    %1085 = vmatprep.subr.mxu0 %v1022
    %1086 = vmatpush1.msra.mxu0 %v1021
    %1087 = vmatprep.subr.mxu0 %v1024
    %1088 = vmatpush1.msra.mxu0 %v1023
    %1089 = vmatprep.subr.mxu0 %v1026
    %1090 = vmatpush1.msra.mxu0 %v1025
    %1091 = vmatprep.subr.mxu0 %v1028
    %1092 = vmatpush1.msra.mxu0 %v1027
    %1093 = vmatprep.subr.mxu0 %v1030
    %1094 = vmatpush1.msra.mxu0 %v1029
    %1095 = vmatprep.subr.mxu0 %v1032
    %1096 = vmatpush1.msra.mxu0 %v1031
    %1097 = vmatprep.subr.mxu0 %v1034
    %1098 = vmatpush1.msra.mxu0 %v1033
    %1099 = vmatprep.subr.mxu0 %v1036
    %1100 = vmatpush1.msra.mxu0 %v1035
    %1101 = vmatprep.subr.mxu0 %v1038
    %1102 = vmatpush1.msra.mxu0 %v1037
    %1103 = vmatprep.subr.mxu0 %v1040
    %1104 = vmatpush1.msra.mxu0 %v1039
    %1105 = vmatprep.subr.mxu0 %v1042
    %1106 = vmatpush1.msra.mxu0 %v1041
    %1107 = vmatprep.subr.mxu0 %v1044
    %1108 = vmatpush1.msra.mxu0 %v1043
    %1109 = vmatprep.subr.mxu0 %v1046
    %1110 = vmatpush1.msra.mxu0 %v1045
    %1111 = vmatprep.subr.mxu0 %v1048
    %1112 = vmatpush1.msra.mxu0 %v1047
    %1113 = vmatprep.subr.mxu0 %v1050
    %1114 = vmatpush1.msra.mxu0 %v1049
    %1115 = vmatprep.subr.mxu0 %v1052
    %1116 = vmatpush1.msra.mxu0 %v1051
    %1117 = vmatprep.subr.mxu0 %v1054
    %1118 = vmatpush1.msra.mxu0 %v1053
    %1119 = vmatprep.subr.mxu0 %v1056
    %1120 = vmatpush1.msra.mxu0 %v1055
    %1121 = vmatprep.mubr.f32.mxu0 %v990
    %1122 = vmatmul.mubr.f32.gmra.mrb[0].mxu0 %v989
    %v1123 = vpop.f32.mrb[0].mxu0
    %v1124 = vadd.f32 0.0, %v1123
    %v1125 = vpop.f32.mrb[0].mxu0
    %v1126 = vadd.f32 0.0, %v1125
    %1127 = vmatprep.mubr.f32.mxu0 %v992
    %1128 = vmatmul.mubr.f32.gmra.mrb[0].mxu0 %v991
    %v1129 = vpop.f32.mrb[0].mxu0
    %v1130 = vadd.f32 0.0, %v1129
    %v1131 = vpop.f32.mrb[0].mxu0
    %v1132 = vadd.f32 0.0, %v1131
    %1133 = vdwg.mxu0
    %v1134 = vadd.f32 %v989, %v1124
    %v1135 = vadd.f32 %v990, %v1126
    %v1136 = vadd.f32 %v991, %v1130
    %v1137 = vadd.f32 %v992, %v1132
    %v1138 = vld [vmem:[%s10] sm:$0x3]
    %v1140 = vlaneseq
    %v1141 = vshrl.u32 %v1140, 7
    %v1142 = vsub.s32 0, %v1141
    %v1143 = vrot.slane %v1138, %v1142
    %v1144 = vlaneseq
    %v1145 = vshrl.u32 %v1144, 7
    %v1146 = vsub.s32 1, %v1145
    %v1147 = vrot.slane %v1138, %v1146
    %v1150 = vadd.f32 %v1134, %v1143
    %v1151 = vadd.f32 %v1135, %v1147
    %v1152 = vadd.f32 %v1136, %v1143
    %v1153 = vadd.f32 %v1137, %v1147
    %1154 = vst [vmem:[#allocation3] sm:$0xff] %v1150
    %1155 = vst [vmem:[#allocation3 + $0x8] sm:$0xff] %v1151
    %1156 = vst [vmem:[#allocation3 + $0x10] sm:$0xff] %v1152
    %1157 = vst [vmem:[#allocation3 + $0x18] sm:$0xff] %v1153
    %v1158 = vld [vmem:[#allocation3] ss:$8 sm:$0x3]
    %s1159 = scalar_lea.vmem [#allocation3], 16
    %v1160 = vld [vmem:[%s1159] ss:$8 sm:$0x3]
    %s1161 = scalar_lea.vmem [#allocation3], 1
    %v1162 = vld [vmem:[%s1161] ss:$8 sm:$0x3]
    %s1163 = scalar_lea.vmem [#allocation3], 17
    %v1164 = vld [vmem:[%s1163] ss:$8 sm:$0x3]
    %s1165 = scalar_lea.vmem [#allocation3], 2
    %v1166 = vld [vmem:[%s1165] ss:$8 sm:$0x3]
    %s1167 = scalar_lea.vmem [#allocation3], 18
    %v1168 = vld [vmem:[%s1167] ss:$8 sm:$0x3]
    %s1169 = scalar_lea.vmem [#allocation3], 3
    %v1170 = vld [vmem:[%s1169] ss:$8 sm:$0x3]
    %s1171 = scalar_lea.vmem [#allocation3], 19
    %v1172 = vld [vmem:[%s1171] ss:$8 sm:$0x3]
    %s1173 = scalar_lea.vmem [#allocation3], 4
    %v1174 = vld [vmem:[%s1173] ss:$8 sm:$0x3]
    %s1175 = scalar_lea.vmem [#allocation3], 20
    %v1176 = vld [vmem:[%s1175] ss:$8 sm:$0x3]
    %s1177 = scalar_lea.vmem [#allocation3], 5
    %v1178 = vld [vmem:[%s1177] ss:$8 sm:$0x3]
    %s1179 = scalar_lea.vmem [#allocation3], 21
    %v1180 = vld [vmem:[%s1179] ss:$8 sm:$0x3]
    %s1181 = scalar_lea.vmem [#allocation3], 6
    %v1182 = vld [vmem:[%s1181] ss:$8 sm:$0x3]
    %s1183 = scalar_lea.vmem [#allocation3], 22
    %v1184 = vld [vmem:[%s1183] ss:$8 sm:$0x3]
    %s1185 = scalar_lea.vmem [#allocation3], 7
    %v1186 = vld [vmem:[%s1185] ss:$8 sm:$0x3]
    %s1187 = scalar_lea.vmem [#allocation3], 23
    %v1188 = vld [vmem:[%s1187] ss:$8 sm:$0x3]
    %v1191 = vcombine.low %v1158, %v1160
    %v1193 = vunpack.c.l.s4 1966171168
    %v1194 = vunpack.c.0.s8 %v1193
    %v1195 = vlaneseq
    %v1196 = vshrl.u32 %v1195, 7
    %v1197 = vsub.s32 %v1194, %v1196
    %v1198 = vrot.slane %v1191, %v1197
    %v1199 = vcombine.high %v1198, %v1198
    %v1201 = vunpack.c.l.s4 1966171168
    %v1202 = vunpack.c.0.s8 %v1201
    %v1203 = vlaneseq
    %v1204 = vshrl.u32 %v1203, 7
    %v1205 = vsub.s32 %v1202, %v1204
    %v1206 = vrot.slane %v1198, %v1205
    %v1208 = vunpack.c.l.s4 1966171168
    %v1209 = vunpack.c.0.s8 %v1208
    %v1210 = vlaneseq
    %v1211 = vshrl.u32 %v1210, 7
    %v1212 = vsub.s32 %v1209, %v1211
    %v1213 = vrot.slane %v1199, %v1212
    %v1218 = vcombine.low %v1162, %v1164
    %v1220 = vunpack.c.l.s4 1966171168
    %v1221 = vunpack.c.0.s8 %v1220
    %v1222 = vlaneseq
    %v1223 = vshrl.u32 %v1222, 7
    %v1224 = vsub.s32 %v1221, %v1223
    %v1225 = vrot.slane %v1218, %v1224
    %v1226 = vcombine.high %v1225, %v1225
    %v1228 = vunpack.c.l.s4 1966171168
    %v1229 = vunpack.c.0.s8 %v1228
    %v1230 = vlaneseq
    %v1231 = vshrl.u32 %v1230, 7
    %v1232 = vsub.s32 %v1229, %v1231
    %v1233 = vrot.slane %v1225, %v1232
    %v1235 = vunpack.c.l.s4 1966171168
    %v1236 = vunpack.c.0.s8 %v1235
    %v1237 = vlaneseq
    %v1238 = vshrl.u32 %v1237, 7
    %v1239 = vsub.s32 %v1236, %v1238
    %v1240 = vrot.slane %v1226, %v1239
    %v1245 = vcombine.low %v1166, %v1168
    %v1247 = vunpack.c.l.s4 1966171168
    %v1248 = vunpack.c.0.s8 %v1247
    %v1249 = vlaneseq
    %v1250 = vshrl.u32 %v1249, 7
    %v1251 = vsub.s32 %v1248, %v1250
    %v1252 = vrot.slane %v1245, %v1251
    %v1253 = vcombine.high %v1252, %v1252
    %v1255 = vunpack.c.l.s4 1966171168
    %v1256 = vunpack.c.0.s8 %v1255
    %v1257 = vlaneseq
    %v1258 = vshrl.u32 %v1257, 7
    %v1259 = vsub.s32 %v1256, %v1258
    %v1260 = vrot.slane %v1252, %v1259
    %v1262 = vunpack.c.l.s4 1966171168
    %v1263 = vunpack.c.0.s8 %v1262
    %v1264 = vlaneseq
    %v1265 = vshrl.u32 %v1264, 7
    %v1266 = vsub.s32 %v1263, %v1265
    %v1267 = vrot.slane %v1253, %v1266
    %v1272 = vcombine.low %v1170, %v1172
    %v1274 = vunpack.c.l.s4 1966171168
    %v1275 = vunpack.c.0.s8 %v1274
    %v1276 = vlaneseq
    %v1277 = vshrl.u32 %v1276, 7
    %v1278 = vsub.s32 %v1275, %v1277
    %v1279 = vrot.slane %v1272, %v1278
    %v1280 = vcombine.high %v1279, %v1279
    %v1282 = vunpack.c.l.s4 1966171168
    %v1283 = vunpack.c.0.s8 %v1282
    %v1284 = vlaneseq
    %v1285 = vshrl.u32 %v1284, 7
    %v1286 = vsub.s32 %v1283, %v1285
    %v1287 = vrot.slane %v1279, %v1286
    %v1289 = vunpack.c.l.s4 1966171168
    %v1290 = vunpack.c.0.s8 %v1289
    %v1291 = vlaneseq
    %v1292 = vshrl.u32 %v1291, 7
    %v1293 = vsub.s32 %v1290, %v1292
    %v1294 = vrot.slane %v1280, %v1293
    %v1299 = vcombine.low %v1174, %v1176
    %v1301 = vunpack.c.l.s4 1966171168
    %v1302 = vunpack.c.0.s8 %v1301
    %v1303 = vlaneseq
    %v1304 = vshrl.u32 %v1303, 7
    %v1305 = vsub.s32 %v1302, %v1304
    %v1306 = vrot.slane %v1299, %v1305
    %v1307 = vcombine.high %v1306, %v1306
    %v1309 = vunpack.c.l.s4 1966171168
    %v1310 = vunpack.c.0.s8 %v1309
    %v1311 = vlaneseq
    %v1312 = vshrl.u32 %v1311, 7
    %v1313 = vsub.s32 %v1310, %v1312
    %v1314 = vrot.slane %v1306, %v1313
    %v1316 = vunpack.c.l.s4 1966171168
    %v1317 = vunpack.c.0.s8 %v1316
    %v1318 = vlaneseq
    %v1319 = vshrl.u32 %v1318, 7
    %v1320 = vsub.s32 %v1317, %v1319
    %v1321 = vrot.slane %v1307, %v1320
    %v1326 = vcombine.low %v1178, %v1180
    %v1328 = vunpack.c.l.s4 1966171168
    %v1329 = vunpack.c.0.s8 %v1328
    %v1330 = vlaneseq
    %v1331 = vshrl.u32 %v1330, 7
    %v1332 = vsub.s32 %v1329, %v1331
    %v1333 = vrot.slane %v1326, %v1332
    %v1334 = vcombine.high %v1333, %v1333
    %v1336 = vunpack.c.l.s4 1966171168
    %v1337 = vunpack.c.0.s8 %v1336
    %v1338 = vlaneseq
    %v1339 = vshrl.u32 %v1338, 7
    %v1340 = vsub.s32 %v1337, %v1339
    %v1341 = vrot.slane %v1333, %v1340
    %v1343 = vunpack.c.l.s4 1966171168
    %v1344 = vunpack.c.0.s8 %v1343
    %v1345 = vlaneseq
    %v1346 = vshrl.u32 %v1345, 7
    %v1347 = vsub.s32 %v1344, %v1346
    %v1348 = vrot.slane %v1334, %v1347
    %v1353 = vcombine.low %v1182, %v1184
    %v1355 = vunpack.c.l.s4 1966171168
    %v1356 = vunpack.c.0.s8 %v1355
    %v1357 = vlaneseq
    %v1358 = vshrl.u32 %v1357, 7
    %v1359 = vsub.s32 %v1356, %v1358
    %v1360 = vrot.slane %v1353, %v1359
    %v1361 = vcombine.high %v1360, %v1360
    %v1363 = vunpack.c.l.s4 1966171168
    %v1364 = vunpack.c.0.s8 %v1363
    %v1365 = vlaneseq
    %v1366 = vshrl.u32 %v1365, 7
    %v1367 = vsub.s32 %v1364, %v1366
    %v1368 = vrot.slane %v1360, %v1367
    %v1370 = vunpack.c.l.s4 1966171168
    %v1371 = vunpack.c.0.s8 %v1370
    %v1372 = vlaneseq
    %v1373 = vshrl.u32 %v1372, 7
    %v1374 = vsub.s32 %v1371, %v1373
    %v1375 = vrot.slane %v1361, %v1374
    %v1380 = vcombine.low %v1186, %v1188
    %v1382 = vunpack.c.l.s4 1966171168
    %v1383 = vunpack.c.0.s8 %v1382
    %v1384 = vlaneseq
    %v1385 = vshrl.u32 %v1384, 7
    %v1386 = vsub.s32 %v1383, %v1385
    %v1387 = vrot.slane %v1380, %v1386
    %v1388 = vcombine.high %v1387, %v1387
    %v1390 = vunpack.c.l.s4 1966171168
    %v1391 = vunpack.c.0.s8 %v1390
    %v1392 = vlaneseq
    %v1393 = vshrl.u32 %v1392, 7
    %v1394 = vsub.s32 %v1391, %v1393
    %v1395 = vrot.slane %v1387, %v1394
    %v1397 = vunpack.c.l.s4 1966171168
    %v1398 = vunpack.c.0.s8 %v1397
    %v1399 = vlaneseq
    %v1400 = vshrl.u32 %v1399, 7
    %v1401 = vsub.s32 %v1398, %v1400
    %v1402 = vrot.slane %v1388, %v1401
    %v1405 = vld [vmem:[#allocation15] sm:$0xff]
    %v1406 = vld [vmem:[#allocation15 + $0x8] sm:$0xff]
    %v1407 = vld [vmem:[#allocation15 + $0x10] sm:$0xff]
    %v1408 = vld [vmem:[#allocation15 + $0x18] sm:$0xff]
    %v1409 = vld [vmem:[#allocation15 + $0x20] sm:$0xff]
    %v1410 = vld [vmem:[#allocation15 + $0x28] sm:$0xff]
    %v1411 = vld [vmem:[#allocation15 + $0x30] sm:$0xff]
    %v1412 = vld [vmem:[#allocation15 + $0x38] sm:$0xff]
    %v1413 = vld [vmem:[#allocation15 + $0x40] sm:$0xff]
    %v1414 = vld [vmem:[#allocation15 + $0x48] sm:$0xff]
    %v1415 = vld [vmem:[#allocation15 + $0x50] sm:$0xff]
    %v1416 = vld [vmem:[#allocation15 + $0x58] sm:$0xff]
    %v1417 = vld [vmem:[#allocation15 + $0x60] sm:$0xff]
    %v1418 = vld [vmem:[#allocation15 + $0x68] sm:$0xff]
    %v1419 = vld [vmem:[#allocation15 + $0x70] sm:$0xff]
    %v1420 = vld [vmem:[#allocation15 + $0x78] sm:$0xff]
    %v1421 = vld [vmem:[#allocation15 + $0x80] sm:$0xff]
    %v1422 = vld [vmem:[#allocation15 + $0x88] sm:$0xff]
    %v1423 = vld [vmem:[#allocation15 + $0x90] sm:$0xff]
    %v1424 = vld [vmem:[#allocation15 + $0x98] sm:$0xff]
    %v1425 = vld [vmem:[#allocation15 + $0xa0] sm:$0xff]
    %v1426 = vld [vmem:[#allocation15 + $0xa8] sm:$0xff]
    %v1427 = vld [vmem:[#allocation15 + $0xb0] sm:$0xff]
    %v1428 = vld [vmem:[#allocation15 + $0xb8] sm:$0xff]
    %v1429 = vld [vmem:[#allocation15 + $0xc0] sm:$0xff]
    %v1430 = vld [vmem:[#allocation15 + $0xc8] sm:$0xff]
    %v1431 = vld [vmem:[#allocation15 + $0xd0] sm:$0xff]
    %v1432 = vld [vmem:[#allocation15 + $0xd8] sm:$0xff]
    %v1433 = vld [vmem:[#allocation15 + $0xe0] sm:$0xff]
    %v1434 = vld [vmem:[#allocation15 + $0xe8] sm:$0xff]
    %v1435 = vld [vmem:[#allocation15 + $0xf0] sm:$0xff]
    %v1436 = vld [vmem:[#allocation15 + $0xf8] sm:$0xff]
    %v1437 = vld [vmem:[#allocation15 + $0x100] sm:$0xff]
    %v1438 = vld [vmem:[#allocation15 + $0x108] sm:$0xff]
    %v1439 = vld [vmem:[#allocation15 + $0x110] sm:$0xff]
    %v1440 = vld [vmem:[#allocation15 + $0x118] sm:$0xff]
    %v1441 = vld [vmem:[#allocation15 + $0x120] sm:$0xff]
    %v1442 = vld [vmem:[#allocation15 + $0x128] sm:$0xff]
    %v1443 = vld [vmem:[#allocation15 + $0x130] sm:$0xff]
    %v1444 = vld [vmem:[#allocation15 + $0x138] sm:$0xff]
    %v1445 = vld [vmem:[#allocation15 + $0x140] sm:$0xff]
    %v1446 = vld [vmem:[#allocation15 + $0x148] sm:$0xff]
    %v1447 = vld [vmem:[#allocation15 + $0x150] sm:$0xff]
    %v1448 = vld [vmem:[#allocation15 + $0x158] sm:$0xff]
    %v1449 = vld [vmem:[#allocation15 + $0x160] sm:$0xff]
    %v1450 = vld [vmem:[#allocation15 + $0x168] sm:$0xff]
    %v1451 = vld [vmem:[#allocation15 + $0x170] sm:$0xff]
    %v1452 = vld [vmem:[#allocation15 + $0x178] sm:$0xff]
    %v1453 = vld [vmem:[#allocation15 + $0x180] sm:$0xff]
    %v1454 = vld [vmem:[#allocation15 + $0x188] sm:$0xff]
    %v1455 = vld [vmem:[#allocation15 + $0x190] sm:$0xff]
    %v1456 = vld [vmem:[#allocation15 + $0x198] sm:$0xff]
    %v1457 = vld [vmem:[#allocation15 + $0x1a0] sm:$0xff]
    %v1458 = vld [vmem:[#allocation15 + $0x1a8] sm:$0xff]
    %v1459 = vld [vmem:[#allocation15 + $0x1b0] sm:$0xff]
    %v1460 = vld [vmem:[#allocation15 + $0x1b8] sm:$0xff]
    %v1461 = vld [vmem:[#allocation15 + $0x1c0] sm:$0xff]
    %v1462 = vld [vmem:[#allocation15 + $0x1c8] sm:$0xff]
    %v1463 = vld [vmem:[#allocation15 + $0x1d0] sm:$0xff]
    %v1464 = vld [vmem:[#allocation15 + $0x1d8] sm:$0xff]
    %v1465 = vld [vmem:[#allocation15 + $0x1e0] sm:$0xff]
    %v1466 = vld [vmem:[#allocation15 + $0x1e8] sm:$0xff]
    %v1467 = vld [vmem:[#allocation15 + $0x1f0] sm:$0xff]
    %v1468 = vld [vmem:[#allocation15 + $0x1f8] sm:$0xff]
    %v1469 = vld [vmem:[#allocation15 + $0x200] sm:$0xff]
    %v1470 = vld [vmem:[#allocation15 + $0x208] sm:$0xff]
    %v1471 = vld [vmem:[#allocation15 + $0x210] sm:$0xff]
    %v1472 = vld [vmem:[#allocation15 + $0x218] sm:$0xff]
    %v1473 = vld [vmem:[#allocation15 + $0x220] sm:$0xff]
    %v1474 = vld [vmem:[#allocation15 + $0x228] sm:$0xff]
    %v1475 = vld [vmem:[#allocation15 + $0x230] sm:$0xff]
    %v1476 = vld [vmem:[#allocation15 + $0x238] sm:$0xff]
    %v1477 = vld [vmem:[#allocation15 + $0x240] sm:$0xff]
    %v1478 = vld [vmem:[#allocation15 + $0x248] sm:$0xff]
    %v1479 = vld [vmem:[#allocation15 + $0x250] sm:$0xff]
    %v1480 = vld [vmem:[#allocation15 + $0x258] sm:$0xff]
    %v1481 = vld [vmem:[#allocation15 + $0x260] sm:$0xff]
    %v1482 = vld [vmem:[#allocation15 + $0x268] sm:$0xff]
    %v1483 = vld [vmem:[#allocation15 + $0x270] sm:$0xff]
    %v1484 = vld [vmem:[#allocation15 + $0x278] sm:$0xff]
    %v1485 = vld [vmem:[#allocation15 + $0x280] sm:$0xff]
    %v1486 = vld [vmem:[#allocation15 + $0x288] sm:$0xff]
    %v1487 = vld [vmem:[#allocation15 + $0x290] sm:$0xff]
    %v1488 = vld [vmem:[#allocation15 + $0x298] sm:$0xff]
    %v1489 = vld [vmem:[#allocation15 + $0x2a0] sm:$0xff]
    %v1490 = vld [vmem:[#allocation15 + $0x2a8] sm:$0xff]
    %v1491 = vld [vmem:[#allocation15 + $0x2b0] sm:$0xff]
    %v1492 = vld [vmem:[#allocation15 + $0x2b8] sm:$0xff]
    %v1493 = vld [vmem:[#allocation15 + $0x2c0] sm:$0xff]
    %v1494 = vld [vmem:[#allocation15 + $0x2c8] sm:$0xff]
    %v1495 = vld [vmem:[#allocation15 + $0x2d0] sm:$0xff]
    %v1496 = vld [vmem:[#allocation15 + $0x2d8] sm:$0xff]
    %v1497 = vld [vmem:[#allocation15 + $0x2e0] sm:$0xff]
    %v1498 = vld [vmem:[#allocation15 + $0x2e8] sm:$0xff]
    %v1499 = vld [vmem:[#allocation15 + $0x2f0] sm:$0xff]
    %v1500 = vld [vmem:[#allocation15 + $0x2f8] sm:$0xff]
    %v1501 = vld [vmem:[#allocation15 + $0x300] sm:$0xff]
    %v1502 = vld [vmem:[#allocation15 + $0x308] sm:$0xff]
    %v1503 = vld [vmem:[#allocation15 + $0x310] sm:$0xff]
    %v1504 = vld [vmem:[#allocation15 + $0x318] sm:$0xff]
    %v1505 = vld [vmem:[#allocation15 + $0x320] sm:$0xff]
    %v1506 = vld [vmem:[#allocation15 + $0x328] sm:$0xff]
    %v1507 = vld [vmem:[#allocation15 + $0x330] sm:$0xff]
    %v1508 = vld [vmem:[#allocation15 + $0x338] sm:$0xff]
    %v1509 = vld [vmem:[#allocation15 + $0x340] sm:$0xff]
    %v1510 = vld [vmem:[#allocation15 + $0x348] sm:$0xff]
    %v1511 = vld [vmem:[#allocation15 + $0x350] sm:$0xff]
    %v1512 = vld [vmem:[#allocation15 + $0x358] sm:$0xff]
    %v1513 = vld [vmem:[#allocation15 + $0x360] sm:$0xff]
    %v1514 = vld [vmem:[#allocation15 + $0x368] sm:$0xff]
    %v1515 = vld [vmem:[#allocation15 + $0x370] sm:$0xff]
    %v1516 = vld [vmem:[#allocation15 + $0x378] sm:$0xff]
    %v1517 = vld [vmem:[#allocation15 + $0x380] sm:$0xff]
    %v1518 = vld [vmem:[#allocation15 + $0x388] sm:$0xff]
    %v1519 = vld [vmem:[#allocation15 + $0x390] sm:$0xff]
    %v1520 = vld [vmem:[#allocation15 + $0x398] sm:$0xff]
    %v1521 = vld [vmem:[#allocation15 + $0x3a0] sm:$0xff]
    %v1522 = vld [vmem:[#allocation15 + $0x3a8] sm:$0xff]
    %v1523 = vld [vmem:[#allocation15 + $0x3b0] sm:$0xff]
    %v1524 = vld [vmem:[#allocation15 + $0x3b8] sm:$0xff]
    %v1525 = vld [vmem:[#allocation15 + $0x3c0] sm:$0xff]
    %v1526 = vld [vmem:[#allocation15 + $0x3c8] sm:$0xff]
    %v1527 = vld [vmem:[#allocation15 + $0x3d0] sm:$0xff]
    %v1528 = vld [vmem:[#allocation15 + $0x3d8] sm:$0xff]
    %v1529 = vld [vmem:[#allocation15 + $0x3e0] sm:$0xff]
    %v1530 = vld [vmem:[#allocation15 + $0x3e8] sm:$0xff]
    %v1531 = vld [vmem:[#allocation15 + $0x3f0] sm:$0xff]
    %v1532 = vld [vmem:[#allocation15 + $0x3f8] sm:$0xff]
    %v1533 = vld [vmem:[#allocation15 + $0x400] sm:$0xff]
    %v1534 = vld [vmem:[#allocation15 + $0x408] sm:$0xff]
    %v1535 = vld [vmem:[#allocation15 + $0x410] sm:$0xff]
    %v1536 = vld [vmem:[#allocation15 + $0x418] sm:$0xff]
    %v1537 = vld [vmem:[#allocation15 + $0x420] sm:$0xff]
    %v1538 = vld [vmem:[#allocation15 + $0x428] sm:$0xff]
    %v1539 = vld [vmem:[#allocation15 + $0x430] sm:$0xff]
    %v1540 = vld [vmem:[#allocation15 + $0x438] sm:$0xff]
    %v1541 = vld [vmem:[#allocation15 + $0x440] sm:$0xff]
    %v1542 = vld [vmem:[#allocation15 + $0x448] sm:$0xff]
    %v1543 = vld [vmem:[#allocation15 + $0x450] sm:$0xff]
    %v1544 = vld [vmem:[#allocation15 + $0x458] sm:$0xff]
    %v1545 = vld [vmem:[#allocation15 + $0x460] sm:$0xff]
    %v1546 = vld [vmem:[#allocation15 + $0x468] sm:$0xff]
    %v1547 = vld [vmem:[#allocation15 + $0x470] sm:$0xff]
    %v1548 = vld [vmem:[#allocation15 + $0x478] sm:$0xff]
    %v1549 = vld [vmem:[#allocation15 + $0x480] sm:$0xff]
    %v1550 = vld [vmem:[#allocation15 + $0x488] sm:$0xff]
    %v1551 = vld [vmem:[#allocation15 + $0x490] sm:$0xff]
    %v1552 = vld [vmem:[#allocation15 + $0x498] sm:$0xff]
    %v1553 = vld [vmem:[#allocation15 + $0x4a0] sm:$0xff]
    %v1554 = vld [vmem:[#allocation15 + $0x4a8] sm:$0xff]
    %v1555 = vld [vmem:[#allocation15 + $0x4b0] sm:$0xff]
    %v1556 = vld [vmem:[#allocation15 + $0x4b8] sm:$0xff]
    %v1557 = vld [vmem:[#allocation15 + $0x4c0] sm:$0xff]
    %v1558 = vld [vmem:[#allocation15 + $0x4c8] sm:$0xff]
    %v1559 = vld [vmem:[#allocation15 + $0x4d0] sm:$0xff]
    %v1560 = vld [vmem:[#allocation15 + $0x4d8] sm:$0xff]
    %v1561 = vld [vmem:[#allocation15 + $0x4e0] sm:$0xff]
    %v1562 = vld [vmem:[#allocation15 + $0x4e8] sm:$0xff]
    %v1563 = vld [vmem:[#allocation15 + $0x4f0] sm:$0xff]
    %v1564 = vld [vmem:[#allocation15 + $0x4f8] sm:$0xff]
    %v1565 = vld [vmem:[#allocation15 + $0x500] sm:$0xff]
    %v1566 = vld [vmem:[#allocation15 + $0x508] sm:$0xff]
    %v1567 = vld [vmem:[#allocation15 + $0x510] sm:$0xff]
    %v1568 = vld [vmem:[#allocation15 + $0x518] sm:$0xff]
    %v1569 = vld [vmem:[#allocation15 + $0x520] sm:$0xff]
    %v1570 = vld [vmem:[#allocation15 + $0x528] sm:$0xff]
    %v1571 = vld [vmem:[#allocation15 + $0x530] sm:$0xff]
    %v1572 = vld [vmem:[#allocation15 + $0x538] sm:$0xff]
    %v1573 = vld [vmem:[#allocation15 + $0x540] sm:$0xff]
    %v1574 = vld [vmem:[#allocation15 + $0x548] sm:$0xff]
    %v1575 = vld [vmem:[#allocation15 + $0x550] sm:$0xff]
    %v1576 = vld [vmem:[#allocation15 + $0x558] sm:$0xff]
    %v1577 = vld [vmem:[#allocation15 + $0x560] sm:$0xff]
    %v1578 = vld [vmem:[#allocation15 + $0x568] sm:$0xff]
    %v1579 = vld [vmem:[#allocation15 + $0x570] sm:$0xff]
    %v1580 = vld [vmem:[#allocation15 + $0x578] sm:$0xff]
    %v1581 = vld [vmem:[#allocation15 + $0x580] sm:$0xff]
    %v1582 = vld [vmem:[#allocation15 + $0x588] sm:$0xff]
    %v1583 = vld [vmem:[#allocation15 + $0x590] sm:$0xff]
    %v1584 = vld [vmem:[#allocation15 + $0x598] sm:$0xff]
    %v1585 = vld [vmem:[#allocation15 + $0x5a0] sm:$0xff]
    %v1586 = vld [vmem:[#allocation15 + $0x5a8] sm:$0xff]
    %v1587 = vld [vmem:[#allocation15 + $0x5b0] sm:$0xff]
    %v1588 = vld [vmem:[#allocation15 + $0x5b8] sm:$0xff]
    %v1589 = vld [vmem:[#allocation15 + $0x5c0] sm:$0xff]
    %v1590 = vld [vmem:[#allocation15 + $0x5c8] sm:$0xff]
    %v1591 = vld [vmem:[#allocation15 + $0x5d0] sm:$0xff]
    %v1592 = vld [vmem:[#allocation15 + $0x5d8] sm:$0xff]
    %v1593 = vld [vmem:[#allocation15 + $0x5e0] sm:$0xff]
    %v1594 = vld [vmem:[#allocation15 + $0x5e8] sm:$0xff]
    %v1595 = vld [vmem:[#allocation15 + $0x5f0] sm:$0xff]
    %v1596 = vld [vmem:[#allocation15 + $0x5f8] sm:$0xff]
    %v1597 = vld [vmem:[#allocation15 + $0x600] sm:$0xff]
    %v1598 = vld [vmem:[#allocation15 + $0x608] sm:$0xff]
    %v1599 = vld [vmem:[#allocation15 + $0x610] sm:$0xff]
    %v1600 = vld [vmem:[#allocation15 + $0x618] sm:$0xff]
    %v1601 = vld [vmem:[#allocation15 + $0x620] sm:$0xff]
    %v1602 = vld [vmem:[#allocation15 + $0x628] sm:$0xff]
    %v1603 = vld [vmem:[#allocation15 + $0x630] sm:$0xff]
    %v1604 = vld [vmem:[#allocation15 + $0x638] sm:$0xff]
    %v1605 = vld [vmem:[#allocation15 + $0x640] sm:$0xff]
    %v1606 = vld [vmem:[#allocation15 + $0x648] sm:$0xff]
    %v1607 = vld [vmem:[#allocation15 + $0x650] sm:$0xff]
    %v1608 = vld [vmem:[#allocation15 + $0x658] sm:$0xff]
    %v1609 = vld [vmem:[#allocation15 + $0x660] sm:$0xff]
    %v1610 = vld [vmem:[#allocation15 + $0x668] sm:$0xff]
    %v1611 = vld [vmem:[#allocation15 + $0x670] sm:$0xff]
    %v1612 = vld [vmem:[#allocation15 + $0x678] sm:$0xff]
    %v1613 = vld [vmem:[#allocation15 + $0x680] sm:$0xff]
    %v1614 = vld [vmem:[#allocation15 + $0x688] sm:$0xff]
    %v1615 = vld [vmem:[#allocation15 + $0x690] sm:$0xff]
    %v1616 = vld [vmem:[#allocation15 + $0x698] sm:$0xff]
    %v1617 = vld [vmem:[#allocation15 + $0x6a0] sm:$0xff]
    %v1618 = vld [vmem:[#allocation15 + $0x6a8] sm:$0xff]
    %v1619 = vld [vmem:[#allocation15 + $0x6b0] sm:$0xff]
    %v1620 = vld [vmem:[#allocation15 + $0x6b8] sm:$0xff]
    %v1621 = vld [vmem:[#allocation15 + $0x6c0] sm:$0xff]
    %v1622 = vld [vmem:[#allocation15 + $0x6c8] sm:$0xff]
    %v1623 = vld [vmem:[#allocation15 + $0x6d0] sm:$0xff]
    %v1624 = vld [vmem:[#allocation15 + $0x6d8] sm:$0xff]
    %v1625 = vld [vmem:[#allocation15 + $0x6e0] sm:$0xff]
    %v1626 = vld [vmem:[#allocation15 + $0x6e8] sm:$0xff]
    %v1627 = vld [vmem:[#allocation15 + $0x6f0] sm:$0xff]
    %v1628 = vld [vmem:[#allocation15 + $0x6f8] sm:$0xff]
    %v1629 = vld [vmem:[#allocation15 + $0x700] sm:$0xff]
    %v1630 = vld [vmem:[#allocation15 + $0x708] sm:$0xff]
    %v1631 = vld [vmem:[#allocation15 + $0x710] sm:$0xff]
    %v1632 = vld [vmem:[#allocation15 + $0x718] sm:$0xff]
    %v1633 = vld [vmem:[#allocation15 + $0x720] sm:$0xff]
    %v1634 = vld [vmem:[#allocation15 + $0x728] sm:$0xff]
    %v1635 = vld [vmem:[#allocation15 + $0x730] sm:$0xff]
    %v1636 = vld [vmem:[#allocation15 + $0x738] sm:$0xff]
    %v1637 = vld [vmem:[#allocation15 + $0x740] sm:$0xff]
    %v1638 = vld [vmem:[#allocation15 + $0x748] sm:$0xff]
    %v1639 = vld [vmem:[#allocation15 + $0x750] sm:$0xff]
    %v1640 = vld [vmem:[#allocation15 + $0x758] sm:$0xff]
    %v1641 = vld [vmem:[#allocation15 + $0x760] sm:$0xff]
    %v1642 = vld [vmem:[#allocation15 + $0x768] sm:$0xff]
    %v1643 = vld [vmem:[#allocation15 + $0x770] sm:$0xff]
    %v1644 = vld [vmem:[#allocation15 + $0x778] sm:$0xff]
    %v1645 = vld [vmem:[#allocation15 + $0x780] sm:$0xff]
    %v1646 = vld [vmem:[#allocation15 + $0x788] sm:$0xff]
    %v1647 = vld [vmem:[#allocation15 + $0x790] sm:$0xff]
    %v1648 = vld [vmem:[#allocation15 + $0x798] sm:$0xff]
    %v1649 = vld [vmem:[#allocation15 + $0x7a0] sm:$0xff]
    %v1650 = vld [vmem:[#allocation15 + $0x7a8] sm:$0xff]
    %v1651 = vld [vmem:[#allocation15 + $0x7b0] sm:$0xff]
    %v1652 = vld [vmem:[#allocation15 + $0x7b8] sm:$0xff]
    %v1653 = vld [vmem:[#allocation15 + $0x7c0] sm:$0xff]
    %v1654 = vld [vmem:[#allocation15 + $0x7c8] sm:$0xff]
    %v1655 = vld [vmem:[#allocation15 + $0x7d0] sm:$0xff]
    %v1656 = vld [vmem:[#allocation15 + $0x7d8] sm:$0xff]
    %v1657 = vld [vmem:[#allocation15 + $0x7e0] sm:$0xff]
    %v1658 = vld [vmem:[#allocation15 + $0x7e8] sm:$0xff]
    %v1659 = vld [vmem:[#allocation15 + $0x7f0] sm:$0xff]
    %v1660 = vld [vmem:[#allocation15 + $0x7f8] sm:$0xff]
    %v1661 = vld [vmem:[%s12] sm:$0x1]
    %v1663 = vlaneseq
    %v1664 = vshrl.u32 %v1663, 7
    %v1665 = vsub.s32 0, %v1664
    %v1666 = vrot.slane %v1661, %v1665
    %1668 = vmatprep.subr.mxu0 0.0
    %1669 = vmatpush1.msra.mxu0 %v1405
    %1670 = vmatprep.subr.mxu0 0.0
    %1671 = vmatpush1.msra.mxu0 %v1406
    %1672 = vmatprep.subr.mxu0 0.0
    %1673 = vmatpush1.msra.mxu0 %v1407
    %1674 = vmatprep.subr.mxu0 0.0
    %1675 = vmatpush1.msra.mxu0 %v1408
    %1676 = vmatprep.subr.mxu0 0.0
    %1677 = vmatpush1.msra.mxu0 %v1409
    %1678 = vmatprep.subr.mxu0 0.0
    %1679 = vmatpush1.msra.mxu0 %v1410
    %1680 = vmatprep.subr.mxu0 0.0
    %1681 = vmatpush1.msra.mxu0 %v1411
    %1682 = vmatprep.subr.mxu0 0.0
    %1683 = vmatpush1.msra.mxu0 %v1412
    %1684 = vmatprep.subr.mxu0 0.0
    %1685 = vmatpush1.msra.mxu0 %v1413
    %1686 = vmatprep.subr.mxu0 0.0
    %1687 = vmatpush1.msra.mxu0 %v1414
    %1688 = vmatprep.subr.mxu0 0.0
    %1689 = vmatpush1.msra.mxu0 %v1415
    %1690 = vmatprep.subr.mxu0 0.0
    %1691 = vmatpush1.msra.mxu0 %v1416
    %1692 = vmatprep.subr.mxu0 0.0
    %1693 = vmatpush1.msra.mxu0 %v1417
    %1694 = vmatprep.subr.mxu0 0.0
    %1695 = vmatpush1.msra.mxu0 %v1418
    %1696 = vmatprep.subr.mxu0 0.0
    %1697 = vmatpush1.msra.mxu0 %v1419
    %1698 = vmatprep.subr.mxu0 0.0
    %1699 = vmatpush1.msra.mxu0 %v1420
    %1700 = vmatprep.subr.mxu0 0.0
    %1701 = vmatpush1.msra.mxu0 %v1421
    %1702 = vmatprep.subr.mxu0 0.0
    %1703 = vmatpush1.msra.mxu0 %v1422
    %1704 = vmatprep.subr.mxu0 0.0
    %1705 = vmatpush1.msra.mxu0 %v1423
    %1706 = vmatprep.subr.mxu0 0.0
    %1707 = vmatpush1.msra.mxu0 %v1424
    %1708 = vmatprep.subr.mxu0 0.0
    %1709 = vmatpush1.msra.mxu0 %v1425
    %1710 = vmatprep.subr.mxu0 0.0
    %1711 = vmatpush1.msra.mxu0 %v1426
    %1712 = vmatprep.subr.mxu0 0.0
    %1713 = vmatpush1.msra.mxu0 %v1427
    %1714 = vmatprep.subr.mxu0 0.0
    %1715 = vmatpush1.msra.mxu0 %v1428
    %1716 = vmatprep.subr.mxu0 0.0
    %1717 = vmatpush1.msra.mxu0 %v1429
    %1718 = vmatprep.subr.mxu0 0.0
    %1719 = vmatpush1.msra.mxu0 %v1430
    %1720 = vmatprep.subr.mxu0 0.0
    %1721 = vmatpush1.msra.mxu0 %v1431
    %1722 = vmatprep.subr.mxu0 0.0
    %1723 = vmatpush1.msra.mxu0 %v1432
    %1724 = vmatprep.subr.mxu0 0.0
    %1725 = vmatpush1.msra.mxu0 %v1433
    %1726 = vmatprep.subr.mxu0 0.0
    %1727 = vmatpush1.msra.mxu0 %v1434
    %1728 = vmatprep.subr.mxu0 0.0
    %1729 = vmatpush1.msra.mxu0 %v1435
    %1730 = vmatprep.subr.mxu0 0.0
    %1731 = vmatpush1.msra.mxu0 %v1436
    %1732 = vmatprep.mubr.f32.mxu0 %v1213
    %1733 = vmatmul.mubr.f32.gmra.mrb[0].mxu0 %v1206
    %v1734 = vpop.f32.mrb[0].mxu0
    %v1735 = vadd.f32 %v1666, %v1734
    %v1736 = vpop.f32.mrb[0].mxu0
    %1737 = vdwg.mxu0
    %1738 = vmatprep.subr.mxu0 0.0
    %1739 = vmatpush1.msra.mxu0 %v1437
    %1740 = vmatprep.subr.mxu0 0.0
    %1741 = vmatpush1.msra.mxu0 %v1438
    %1742 = vmatprep.subr.mxu0 0.0
    %1743 = vmatpush1.msra.mxu0 %v1439
    %1744 = vmatprep.subr.mxu0 0.0
    %1745 = vmatpush1.msra.mxu0 %v1440
    %1746 = vmatprep.subr.mxu0 0.0
    %1747 = vmatpush1.msra.mxu0 %v1441
    %1748 = vmatprep.subr.mxu0 0.0
    %1749 = vmatpush1.msra.mxu0 %v1442
    %1750 = vmatprep.subr.mxu0 0.0
    %1751 = vmatpush1.msra.mxu0 %v1443
    %1752 = vmatprep.subr.mxu0 0.0
    %1753 = vmatpush1.msra.mxu0 %v1444
    %1754 = vmatprep.subr.mxu0 0.0
    %1755 = vmatpush1.msra.mxu0 %v1445
    %1756 = vmatprep.subr.mxu0 0.0
    %1757 = vmatpush1.msra.mxu0 %v1446
    %1758 = vmatprep.subr.mxu0 0.0
    %1759 = vmatpush1.msra.mxu0 %v1447
    %1760 = vmatprep.subr.mxu0 0.0
    %1761 = vmatpush1.msra.mxu0 %v1448
    %1762 = vmatprep.subr.mxu0 0.0
    %1763 = vmatpush1.msra.mxu0 %v1449
    %1764 = vmatprep.subr.mxu0 0.0
    %1765 = vmatpush1.msra.mxu0 %v1450
    %1766 = vmatprep.subr.mxu0 0.0
    %1767 = vmatpush1.msra.mxu0 %v1451
    %1768 = vmatprep.subr.mxu0 0.0
    %1769 = vmatpush1.msra.mxu0 %v1452
    %1770 = vmatprep.subr.mxu0 0.0
    %1771 = vmatpush1.msra.mxu0 %v1453
    %1772 = vmatprep.subr.mxu0 0.0
    %1773 = vmatpush1.msra.mxu0 %v1454
    %1774 = vmatprep.subr.mxu0 0.0
    %1775 = vmatpush1.msra.mxu0 %v1455
    %1776 = vmatprep.subr.mxu0 0.0
    %1777 = vmatpush1.msra.mxu0 %v1456
    %1778 = vmatprep.subr.mxu0 0.0
    %1779 = vmatpush1.msra.mxu0 %v1457
    %1780 = vmatprep.subr.mxu0 0.0
    %1781 = vmatpush1.msra.mxu0 %v1458
    %1782 = vmatprep.subr.mxu0 0.0
    %1783 = vmatpush1.msra.mxu0 %v1459
    %1784 = vmatprep.subr.mxu0 0.0
    %1785 = vmatpush1.msra.mxu0 %v1460
    %1786 = vmatprep.subr.mxu0 0.0
    %1787 = vmatpush1.msra.mxu0 %v1461
    %1788 = vmatprep.subr.mxu0 0.0
    %1789 = vmatpush1.msra.mxu0 %v1462
    %1790 = vmatprep.subr.mxu0 0.0
    %1791 = vmatpush1.msra.mxu0 %v1463
    %1792 = vmatprep.subr.mxu0 0.0
    %1793 = vmatpush1.msra.mxu0 %v1464
    %1794 = vmatprep.subr.mxu0 0.0
    %1795 = vmatpush1.msra.mxu0 %v1465
    %1796 = vmatprep.subr.mxu0 0.0
    %1797 = vmatpush1.msra.mxu0 %v1466
    %1798 = vmatprep.subr.mxu0 0.0
    %1799 = vmatpush1.msra.mxu0 %v1467
    %1800 = vmatprep.subr.mxu0 0.0
    %1801 = vmatpush1.msra.mxu0 %v1468
    %1802 = vmatprep.mubr.f32.mxu0 %v1240
    %1803 = vmatmul.mubr.f32.gmra.mrb[0].mxu0 %v1233
    %v1804 = vpop.f32.mrb[0].mxu0
    %v1805 = vadd.f32 %v1735, %v1804
    %v1806 = vpop.f32.mrb[0].mxu0
    %1807 = vdwg.mxu0
    %1808 = vmatprep.subr.mxu0 0.0
    %1809 = vmatpush1.msra.mxu0 %v1469
    %1810 = vmatprep.subr.mxu0 0.0
    %1811 = vmatpush1.msra.mxu0 %v1470
    %1812 = vmatprep.subr.mxu0 0.0
    %1813 = vmatpush1.msra.mxu0 %v1471
    %1814 = vmatprep.subr.mxu0 0.0
    %1815 = vmatpush1.msra.mxu0 %v1472
    %1816 = vmatprep.subr.mxu0 0.0
    %1817 = vmatpush1.msra.mxu0 %v1473
    %1818 = vmatprep.subr.mxu0 0.0
    %1819 = vmatpush1.msra.mxu0 %v1474
    %1820 = vmatprep.subr.mxu0 0.0
    %1821 = vmatpush1.msra.mxu0 %v1475
    %1822 = vmatprep.subr.mxu0 0.0
    %1823 = vmatpush1.msra.mxu0 %v1476
    %1824 = vmatprep.subr.mxu0 0.0
    %1825 = vmatpush1.msra.mxu0 %v1477
    %1826 = vmatprep.subr.mxu0 0.0
    %1827 = vmatpush1.msra.mxu0 %v1478
    %1828 = vmatprep.subr.mxu0 0.0
    %1829 = vmatpush1.msra.mxu0 %v1479
    %1830 = vmatprep.subr.mxu0 0.0
    %1831 = vmatpush1.msra.mxu0 %v1480
    %1832 = vmatprep.subr.mxu0 0.0
    %1833 = vmatpush1.msra.mxu0 %v1481
    %1834 = vmatprep.subr.mxu0 0.0
    %1835 = vmatpush1.msra.mxu0 %v1482
    %1836 = vmatprep.subr.mxu0 0.0
    %1837 = vmatpush1.msra.mxu0 %v1483
    %1838 = vmatprep.subr.mxu0 0.0
    %1839 = vmatpush1.msra.mxu0 %v1484
    %1840 = vmatprep.subr.mxu0 0.0
    %1841 = vmatpush1.msra.mxu0 %v1485
    %1842 = vmatprep.subr.mxu0 0.0
    %1843 = vmatpush1.msra.mxu0 %v1486
    %1844 = vmatprep.subr.mxu0 0.0
    %1845 = vmatpush1.msra.mxu0 %v1487
    %1846 = vmatprep.subr.mxu0 0.0
    %1847 = vmatpush1.msra.mxu0 %v1488
    %1848 = vmatprep.subr.mxu0 0.0
    %1849 = vmatpush1.msra.mxu0 %v1489
    %1850 = vmatprep.subr.mxu0 0.0
    %1851 = vmatpush1.msra.mxu0 %v1490
    %1852 = vmatprep.subr.mxu0 0.0
    %1853 = vmatpush1.msra.mxu0 %v1491
    %1854 = vmatprep.subr.mxu0 0.0
    %1855 = vmatpush1.msra.mxu0 %v1492
    %1856 = vmatprep.subr.mxu0 0.0
    %1857 = vmatpush1.msra.mxu0 %v1493
    %1858 = vmatprep.subr.mxu0 0.0
    %1859 = vmatpush1.msra.mxu0 %v1494
    %1860 = vmatprep.subr.mxu0 0.0
    %1861 = vmatpush1.msra.mxu0 %v1495
    %1862 = vmatprep.subr.mxu0 0.0
    %1863 = vmatpush1.msra.mxu0 %v1496
    %1864 = vmatprep.subr.mxu0 0.0
    %1865 = vmatpush1.msra.mxu0 %v1497
    %1866 = vmatprep.subr.mxu0 0.0
    %1867 = vmatpush1.msra.mxu0 %v1498
    %1868 = vmatprep.subr.mxu0 0.0
    %1869 = vmatpush1.msra.mxu0 %v1499
    %1870 = vmatprep.subr.mxu0 0.0
    %1871 = vmatpush1.msra.mxu0 %v1500
    %1872 = vmatprep.mubr.f32.mxu0 %v1267
    %1873 = vmatmul.mubr.f32.gmra.mrb[0].mxu0 %v1260
    %v1874 = vpop.f32.mrb[0].mxu0
    %v1875 = vadd.f32 %v1805, %v1874
    %v1876 = vpop.f32.mrb[0].mxu0
    %1877 = vdwg.mxu0
    %1878 = vmatprep.subr.mxu0 0.0
    %1879 = vmatpush1.msra.mxu0 %v1501
    %1880 = vmatprep.subr.mxu0 0.0
    %1881 = vmatpush1.msra.mxu0 %v1502
    %1882 = vmatprep.subr.mxu0 0.0
    %1883 = vmatpush1.msra.mxu0 %v1503
    %1884 = vmatprep.subr.mxu0 0.0
    %1885 = vmatpush1.msra.mxu0 %v1504
    %1886 = vmatprep.subr.mxu0 0.0
    %1887 = vmatpush1.msra.mxu0 %v1505
    %1888 = vmatprep.subr.mxu0 0.0
    %1889 = vmatpush1.msra.mxu0 %v1506
    %1890 = vmatprep.subr.mxu0 0.0
    %1891 = vmatpush1.msra.mxu0 %v1507
    %1892 = vmatprep.subr.mxu0 0.0
    %1893 = vmatpush1.msra.mxu0 %v1508
    %1894 = vmatprep.subr.mxu0 0.0
    %1895 = vmatpush1.msra.mxu0 %v1509
    %1896 = vmatprep.subr.mxu0 0.0
    %1897 = vmatpush1.msra.mxu0 %v1510
    %1898 = vmatprep.subr.mxu0 0.0
    %1899 = vmatpush1.msra.mxu0 %v1511
    %1900 = vmatprep.subr.mxu0 0.0
    %1901 = vmatpush1.msra.mxu0 %v1512
    %1902 = vmatprep.subr.mxu0 0.0
    %1903 = vmatpush1.msra.mxu0 %v1513
    %1904 = vmatprep.subr.mxu0 0.0
    %1905 = vmatpush1.msra.mxu0 %v1514
    %1906 = vmatprep.subr.mxu0 0.0
    %1907 = vmatpush1.msra.mxu0 %v1515
    %1908 = vmatprep.subr.mxu0 0.0
    %1909 = vmatpush1.msra.mxu0 %v1516
    %1910 = vmatprep.subr.mxu0 0.0
    %1911 = vmatpush1.msra.mxu0 %v1517
    %1912 = vmatprep.subr.mxu0 0.0
    %1913 = vmatpush1.msra.mxu0 %v1518
    %1914 = vmatprep.subr.mxu0 0.0
    %1915 = vmatpush1.msra.mxu0 %v1519
    %1916 = vmatprep.subr.mxu0 0.0
    %1917 = vmatpush1.msra.mxu0 %v1520
    %1918 = vmatprep.subr.mxu0 0.0
    %1919 = vmatpush1.msra.mxu0 %v1521
    %1920 = vmatprep.subr.mxu0 0.0
    %1921 = vmatpush1.msra.mxu0 %v1522
    %1922 = vmatprep.subr.mxu0 0.0
    %1923 = vmatpush1.msra.mxu0 %v1523
    %1924 = vmatprep.subr.mxu0 0.0
    %1925 = vmatpush1.msra.mxu0 %v1524
    %1926 = vmatprep.subr.mxu0 0.0
    %1927 = vmatpush1.msra.mxu0 %v1525
    %1928 = vmatprep.subr.mxu0 0.0
    %1929 = vmatpush1.msra.mxu0 %v1526
    %1930 = vmatprep.subr.mxu0 0.0
    %1931 = vmatpush1.msra.mxu0 %v1527
    %1932 = vmatprep.subr.mxu0 0.0
    %1933 = vmatpush1.msra.mxu0 %v1528
    %1934 = vmatprep.subr.mxu0 0.0
    %1935 = vmatpush1.msra.mxu0 %v1529
    %1936 = vmatprep.subr.mxu0 0.0
    %1937 = vmatpush1.msra.mxu0 %v1530
    %1938 = vmatprep.subr.mxu0 0.0
    %1939 = vmatpush1.msra.mxu0 %v1531
    %1940 = vmatprep.subr.mxu0 0.0
    %1941 = vmatpush1.msra.mxu0 %v1532
    %1942 = vmatprep.mubr.f32.mxu0 %v1294
    %1943 = vmatmul.mubr.f32.gmra.mrb[0].mxu0 %v1287
    %v1944 = vpop.f32.mrb[0].mxu0
    %v1945 = vadd.f32 %v1875, %v1944
    %v1946 = vpop.f32.mrb[0].mxu0
    %1947 = vdwg.mxu0
    %1948 = vmatprep.subr.mxu0 0.0
    %1949 = vmatpush1.msra.mxu0 %v1533
    %1950 = vmatprep.subr.mxu0 0.0
    %1951 = vmatpush1.msra.mxu0 %v1534
    %1952 = vmatprep.subr.mxu0 0.0
    %1953 = vmatpush1.msra.mxu0 %v1535
    %1954 = vmatprep.subr.mxu0 0.0
    %1955 = vmatpush1.msra.mxu0 %v1536
    %1956 = vmatprep.subr.mxu0 0.0
    %1957 = vmatpush1.msra.mxu0 %v1537
    %1958 = vmatprep.subr.mxu0 0.0
    %1959 = vmatpush1.msra.mxu0 %v1538
    %1960 = vmatprep.subr.mxu0 0.0
    %1961 = vmatpush1.msra.mxu0 %v1539
    %1962 = vmatprep.subr.mxu0 0.0
    %1963 = vmatpush1.msra.mxu0 %v1540
    %1964 = vmatprep.subr.mxu0 0.0
    %1965 = vmatpush1.msra.mxu0 %v1541
    %1966 = vmatprep.subr.mxu0 0.0
    %1967 = vmatpush1.msra.mxu0 %v1542
    %1968 = vmatprep.subr.mxu0 0.0
    %1969 = vmatpush1.msra.mxu0 %v1543
    %1970 = vmatprep.subr.mxu0 0.0
    %1971 = vmatpush1.msra.mxu0 %v1544
    %1972 = vmatprep.subr.mxu0 0.0
    %1973 = vmatpush1.msra.mxu0 %v1545
    %1974 = vmatprep.subr.mxu0 0.0
    %1975 = vmatpush1.msra.mxu0 %v1546
    %1976 = vmatprep.subr.mxu0 0.0
    %1977 = vmatpush1.msra.mxu0 %v1547
    %1978 = vmatprep.subr.mxu0 0.0
    %1979 = vmatpush1.msra.mxu0 %v1548
    %1980 = vmatprep.subr.mxu0 0.0
    %1981 = vmatpush1.msra.mxu0 %v1549
    %1982 = vmatprep.subr.mxu0 0.0
    %1983 = vmatpush1.msra.mxu0 %v1550
    %1984 = vmatprep.subr.mxu0 0.0
    %1985 = vmatpush1.msra.mxu0 %v1551
    %1986 = vmatprep.subr.mxu0 0.0
    %1987 = vmatpush1.msra.mxu0 %v1552
    %1988 = vmatprep.subr.mxu0 0.0
    %1989 = vmatpush1.msra.mxu0 %v1553
    %1990 = vmatprep.subr.mxu0 0.0
    %1991 = vmatpush1.msra.mxu0 %v1554
    %1992 = vmatprep.subr.mxu0 0.0
    %1993 = vmatpush1.msra.mxu0 %v1555
    %1994 = vmatprep.subr.mxu0 0.0
    %1995 = vmatpush1.msra.mxu0 %v1556
    %1996 = vmatprep.subr.mxu0 0.0
    %1997 = vmatpush1.msra.mxu0 %v1557
    %1998 = vmatprep.subr.mxu0 0.0
    %1999 = vmatpush1.msra.mxu0 %v1558
    %2000 = vmatprep.subr.mxu0 0.0
    %2001 = vmatpush1.msra.mxu0 %v1559
    %2002 = vmatprep.subr.mxu0 0.0
    %2003 = vmatpush1.msra.mxu0 %v1560
    %2004 = vmatprep.subr.mxu0 0.0
    %2005 = vmatpush1.msra.mxu0 %v1561
    %2006 = vmatprep.subr.mxu0 0.0
    %2007 = vmatpush1.msra.mxu0 %v1562
    %2008 = vmatprep.subr.mxu0 0.0
    %2009 = vmatpush1.msra.mxu0 %v1563
    %2010 = vmatprep.subr.mxu0 0.0
    %2011 = vmatpush1.msra.mxu0 %v1564
    %2012 = vmatprep.mubr.f32.mxu0 %v1321
    %2013 = vmatmul.mubr.f32.gmra.mrb[0].mxu0 %v1314
    %v2014 = vpop.f32.mrb[0].mxu0
    %v2015 = vadd.f32 %v1945, %v2014
    %v2016 = vpop.f32.mrb[0].mxu0
    %2017 = vdwg.mxu0
    %2018 = vmatprep.subr.mxu0 0.0
    %2019 = vmatpush1.msra.mxu0 %v1565
    %2020 = vmatprep.subr.mxu0 0.0
    %2021 = vmatpush1.msra.mxu0 %v1566
    %2022 = vmatprep.subr.mxu0 0.0
    %2023 = vmatpush1.msra.mxu0 %v1567
    %2024 = vmatprep.subr.mxu0 0.0
    %2025 = vmatpush1.msra.mxu0 %v1568
    %2026 = vmatprep.subr.mxu0 0.0
    %2027 = vmatpush1.msra.mxu0 %v1569
    %2028 = vmatprep.subr.mxu0 0.0
    %2029 = vmatpush1.msra.mxu0 %v1570
    %2030 = vmatprep.subr.mxu0 0.0
    %2031 = vmatpush1.msra.mxu0 %v1571
    %2032 = vmatprep.subr.mxu0 0.0
    %2033 = vmatpush1.msra.mxu0 %v1572
    %2034 = vmatprep.subr.mxu0 0.0
    %2035 = vmatpush1.msra.mxu0 %v1573
    %2036 = vmatprep.subr.mxu0 0.0
    %2037 = vmatpush1.msra.mxu0 %v1574
    %2038 = vmatprep.subr.mxu0 0.0
    %2039 = vmatpush1.msra.mxu0 %v1575
    %2040 = vmatprep.subr.mxu0 0.0
    %2041 = vmatpush1.msra.mxu0 %v1576
    %2042 = vmatprep.subr.mxu0 0.0
    %2043 = vmatpush1.msra.mxu0 %v1577
    %2044 = vmatprep.subr.mxu0 0.0
    %2045 = vmatpush1.msra.mxu0 %v1578
    %2046 = vmatprep.subr.mxu0 0.0
    %2047 = vmatpush1.msra.mxu0 %v1579
    %2048 = vmatprep.subr.mxu0 0.0
    %2049 = vmatpush1.msra.mxu0 %v1580
    %2050 = vmatprep.subr.mxu0 0.0
    %2051 = vmatpush1.msra.mxu0 %v1581
    %2052 = vmatprep.subr.mxu0 0.0
    %2053 = vmatpush1.msra.mxu0 %v1582
    %2054 = vmatprep.subr.mxu0 0.0
    %2055 = vmatpush1.msra.mxu0 %v1583
    %2056 = vmatprep.subr.mxu0 0.0
    %2057 = vmatpush1.msra.mxu0 %v1584
    %2058 = vmatprep.subr.mxu0 0.0
    %2059 = vmatpush1.msra.mxu0 %v1585
    %2060 = vmatprep.subr.mxu0 0.0
    %2061 = vmatpush1.msra.mxu0 %v1586
    %2062 = vmatprep.subr.mxu0 0.0
    %2063 = vmatpush1.msra.mxu0 %v1587
    %2064 = vmatprep.subr.mxu0 0.0
    %2065 = vmatpush1.msra.mxu0 %v1588
    %2066 = vmatprep.subr.mxu0 0.0
    %2067 = vmatpush1.msra.mxu0 %v1589
    %2068 = vmatprep.subr.mxu0 0.0
    %2069 = vmatpush1.msra.mxu0 %v1590
    %2070 = vmatprep.subr.mxu0 0.0
    %2071 = vmatpush1.msra.mxu0 %v1591
    %2072 = vmatprep.subr.mxu0 0.0
    %2073 = vmatpush1.msra.mxu0 %v1592
    %2074 = vmatprep.subr.mxu0 0.0
    %2075 = vmatpush1.msra.mxu0 %v1593
    %2076 = vmatprep.subr.mxu0 0.0
    %2077 = vmatpush1.msra.mxu0 %v1594
    %2078 = vmatprep.subr.mxu0 0.0
    %2079 = vmatpush1.msra.mxu0 %v1595
    %2080 = vmatprep.subr.mxu0 0.0
    %2081 = vmatpush1.msra.mxu0 %v1596
    %2082 = vmatprep.mubr.f32.mxu0 %v1348
    %2083 = vmatmul.mubr.f32.gmra.mrb[0].mxu0 %v1341
    %v2084 = vpop.f32.mrb[0].mxu0
    %v2085 = vadd.f32 %v2015, %v2084
    %v2086 = vpop.f32.mrb[0].mxu0
    %2087 = vdwg.mxu0
    %2088 = vmatprep.subr.mxu0 0.0
    %2089 = vmatpush1.msra.mxu0 %v1597
    %2090 = vmatprep.subr.mxu0 0.0
    %2091 = vmatpush1.msra.mxu0 %v1598
    %2092 = vmatprep.subr.mxu0 0.0
    %2093 = vmatpush1.msra.mxu0 %v1599
    %2094 = vmatprep.subr.mxu0 0.0
    %2095 = vmatpush1.msra.mxu0 %v1600
    %2096 = vmatprep.subr.mxu0 0.0
    %2097 = vmatpush1.msra.mxu0 %v1601
    %2098 = vmatprep.subr.mxu0 0.0
    %2099 = vmatpush1.msra.mxu0 %v1602
    %2100 = vmatprep.subr.mxu0 0.0
    %2101 = vmatpush1.msra.mxu0 %v1603
    %2102 = vmatprep.subr.mxu0 0.0
    %2103 = vmatpush1.msra.mxu0 %v1604
    %2104 = vmatprep.subr.mxu0 0.0
    %2105 = vmatpush1.msra.mxu0 %v1605
    %2106 = vmatprep.subr.mxu0 0.0
    %2107 = vmatpush1.msra.mxu0 %v1606
    %2108 = vmatprep.subr.mxu0 0.0
    %2109 = vmatpush1.msra.mxu0 %v1607
    %2110 = vmatprep.subr.mxu0 0.0
    %2111 = vmatpush1.msra.mxu0 %v1608
    %2112 = vmatprep.subr.mxu0 0.0
    %2113 = vmatpush1.msra.mxu0 %v1609
    %2114 = vmatprep.subr.mxu0 0.0
    %2115 = vmatpush1.msra.mxu0 %v1610
    %2116 = vmatprep.subr.mxu0 0.0
    %2117 = vmatpush1.msra.mxu0 %v1611
    %2118 = vmatprep.subr.mxu0 0.0
    %2119 = vmatpush1.msra.mxu0 %v1612
    %2120 = vmatprep.subr.mxu0 0.0
    %2121 = vmatpush1.msra.mxu0 %v1613
    %2122 = vmatprep.subr.mxu0 0.0
    %2123 = vmatpush1.msra.mxu0 %v1614
    %2124 = vmatprep.subr.mxu0 0.0
    %2125 = vmatpush1.msra.mxu0 %v1615
    %2126 = vmatprep.subr.mxu0 0.0
    %2127 = vmatpush1.msra.mxu0 %v1616
    %2128 = vmatprep.subr.mxu0 0.0
    %2129 = vmatpush1.msra.mxu0 %v1617
    %2130 = vmatprep.subr.mxu0 0.0
    %2131 = vmatpush1.msra.mxu0 %v1618
    %2132 = vmatprep.subr.mxu0 0.0
    %2133 = vmatpush1.msra.mxu0 %v1619
    %2134 = vmatprep.subr.mxu0 0.0
    %2135 = vmatpush1.msra.mxu0 %v1620
    %2136 = vmatprep.subr.mxu0 0.0
    %2137 = vmatpush1.msra.mxu0 %v1621
    %2138 = vmatprep.subr.mxu0 0.0
    %2139 = vmatpush1.msra.mxu0 %v1622
    %2140 = vmatprep.subr.mxu0 0.0
    %2141 = vmatpush1.msra.mxu0 %v1623
    %2142 = vmatprep.subr.mxu0 0.0
    %2143 = vmatpush1.msra.mxu0 %v1624
    %2144 = vmatprep.subr.mxu0 0.0
    %2145 = vmatpush1.msra.mxu0 %v1625
    %2146 = vmatprep.subr.mxu0 0.0
    %2147 = vmatpush1.msra.mxu0 %v1626
    %2148 = vmatprep.subr.mxu0 0.0
    %2149 = vmatpush1.msra.mxu0 %v1627
    %2150 = vmatprep.subr.mxu0 0.0
    %2151 = vmatpush1.msra.mxu0 %v1628
    %2152 = vmatprep.mubr.f32.mxu0 %v1375
    %2153 = vmatmul.mubr.f32.gmra.mrb[0].mxu0 %v1368
    %v2154 = vpop.f32.mrb[0].mxu0
    %v2155 = vadd.f32 %v2085, %v2154
    %v2156 = vpop.f32.mrb[0].mxu0
    %2157 = vdwg.mxu0
    %2158 = vmatprep.subr.mxu0 0.0
    %2159 = vmatpush1.msra.mxu0 %v1629
    %2160 = vmatprep.subr.mxu0 0.0
    %2161 = vmatpush1.msra.mxu0 %v1630
    %2162 = vmatprep.subr.mxu0 0.0
    %2163 = vmatpush1.msra.mxu0 %v1631
    %2164 = vmatprep.subr.mxu0 0.0
    %2165 = vmatpush1.msra.mxu0 %v1632
    %2166 = vmatprep.subr.mxu0 0.0
    %2167 = vmatpush1.msra.mxu0 %v1633
    %2168 = vmatprep.subr.mxu0 0.0
    %2169 = vmatpush1.msra.mxu0 %v1634
    %2170 = vmatprep.subr.mxu0 0.0
    %2171 = vmatpush1.msra.mxu0 %v1635
    %2172 = vmatprep.subr.mxu0 0.0
    %2173 = vmatpush1.msra.mxu0 %v1636
    %2174 = vmatprep.subr.mxu0 0.0
    %2175 = vmatpush1.msra.mxu0 %v1637
    %2176 = vmatprep.subr.mxu0 0.0
    %2177 = vmatpush1.msra.mxu0 %v1638
    %2178 = vmatprep.subr.mxu0 0.0
    %2179 = vmatpush1.msra.mxu0 %v1639
    %2180 = vmatprep.subr.mxu0 0.0
    %2181 = vmatpush1.msra.mxu0 %v1640
    %2182 = vmatprep.subr.mxu0 0.0
    %2183 = vmatpush1.msra.mxu0 %v1641
    %2184 = vmatprep.subr.mxu0 0.0
    %2185 = vmatpush1.msra.mxu0 %v1642
    %2186 = vmatprep.subr.mxu0 0.0
    %2187 = vmatpush1.msra.mxu0 %v1643
    %2188 = vmatprep.subr.mxu0 0.0
    %2189 = vmatpush1.msra.mxu0 %v1644
    %2190 = vmatprep.subr.mxu0 0.0
    %2191 = vmatpush1.msra.mxu0 %v1645
    %2192 = vmatprep.subr.mxu0 0.0
    %2193 = vmatpush1.msra.mxu0 %v1646
    %2194 = vmatprep.subr.mxu0 0.0
    %2195 = vmatpush1.msra.mxu0 %v1647
    %2196 = vmatprep.subr.mxu0 0.0
    %2197 = vmatpush1.msra.mxu0 %v1648
    %2198 = vmatprep.subr.mxu0 0.0
    %2199 = vmatpush1.msra.mxu0 %v1649
    %2200 = vmatprep.subr.mxu0 0.0
    %2201 = vmatpush1.msra.mxu0 %v1650
    %2202 = vmatprep.subr.mxu0 0.0
    %2203 = vmatpush1.msra.mxu0 %v1651
    %2204 = vmatprep.subr.mxu0 0.0
    %2205 = vmatpush1.msra.mxu0 %v1652
    %2206 = vmatprep.subr.mxu0 0.0
    %2207 = vmatpush1.msra.mxu0 %v1653
    %2208 = vmatprep.subr.mxu0 0.0
    %2209 = vmatpush1.msra.mxu0 %v1654
    %2210 = vmatprep.subr.mxu0 0.0
    %2211 = vmatpush1.msra.mxu0 %v1655
    %2212 = vmatprep.subr.mxu0 0.0
    %2213 = vmatpush1.msra.mxu0 %v1656
    %2214 = vmatprep.subr.mxu0 0.0
    %2215 = vmatpush1.msra.mxu0 %v1657
    %2216 = vmatprep.subr.mxu0 0.0
    %2217 = vmatpush1.msra.mxu0 %v1658
    %2218 = vmatprep.subr.mxu0 0.0
    %2219 = vmatpush1.msra.mxu0 %v1659
    %2220 = vmatprep.subr.mxu0 0.0
    %2221 = vmatpush1.msra.mxu0 %v1660
    %2222 = vmatprep.mubr.f32.mxu0 %v1402
    %2223 = vmatmul.mubr.f32.gmra.mrb[0].mxu0 %v1395
    %v2224 = vpop.f32.mrb[0].mxu0
    %v2225 = vadd.f32 %v2155, %v2224
    %v2226 = vpop.f32.mrb[0].mxu0
    %2227 = vdwg.mxu0
    %v2228 = vmax.f32 %v2225, 0.0
    %v2229 = vld [vmem:[#allocation16] sm:$0xff]
    %v2230 = vld [vmem:[#allocation16 + $0x8] sm:$0xff]
    %v2231 = vld [vmem:[#allocation16 + $0x10] sm:$0xff]
    %v2232 = vld [vmem:[#allocation16 + $0x18] sm:$0xff]
    %v2233 = vld [vmem:[#allocation16 + $0x20] sm:$0xff]
    %v2234 = vld [vmem:[#allocation16 + $0x28] sm:$0xff]
    %v2235 = vld [vmem:[#allocation16 + $0x30] sm:$0xff]
    %v2236 = vld [vmem:[#allocation16 + $0x38] sm:$0xff]
    %v2237 = vld [vmem:[#allocation16 + $0x40] sm:$0xff]
    %v2238 = vld [vmem:[#allocation16 + $0x48] sm:$0xff]
    %v2239 = vld [vmem:[#allocation16 + $0x50] sm:$0xff]
    %v2240 = vld [vmem:[#allocation16 + $0x58] sm:$0xff]
    %v2241 = vld [vmem:[#allocation16 + $0x60] sm:$0xff]
    %v2242 = vld [vmem:[#allocation16 + $0x68] sm:$0xff]
    %v2243 = vld [vmem:[#allocation16 + $0x70] sm:$0xff]
    %v2244 = vld [vmem:[#allocation16 + $0x78] sm:$0xff]
    %v2245 = vld [vmem:[%s14] sm:$0x1]
    %v2247 = vlaneseq
    %v2248 = vshrl.u32 %v2247, 7
    %v2249 = vsub.s32 0, %v2248
    %v2250 = vrot.slane %v2245, %v2249
    %2252 = vmatprep.subr.mxu0 0.0
    %2253 = vmatpush1.msra.mxu0 %v2229
    %2254 = vmatprep.subr.mxu0 0.0
    %2255 = vmatpush1.msra.mxu0 %v2230
    %2256 = vmatprep.subr.mxu0 0.0
    %2257 = vmatpush1.msra.mxu0 %v2231
    %2258 = vmatprep.subr.mxu0 0.0
    %2259 = vmatpush1.msra.mxu0 %v2232
    %2260 = vmatprep.subr.mxu0 0.0
    %2261 = vmatpush1.msra.mxu0 %v2233
    %2262 = vmatprep.subr.mxu0 0.0
    %2263 = vmatpush1.msra.mxu0 %v2234
    %2264 = vmatprep.subr.mxu0 0.0
    %2265 = vmatpush1.msra.mxu0 %v2235
    %2266 = vmatprep.subr.mxu0 0.0
    %2267 = vmatpush1.msra.mxu0 %v2236
    %2268 = vmatprep.subr.mxu0 0.0
    %2269 = vmatpush1.msra.mxu0 %v2237
    %2270 = vmatprep.subr.mxu0 0.0
    %2271 = vmatpush1.msra.mxu0 %v2238
    %2272 = vmatprep.subr.mxu0 0.0
    %2273 = vmatpush1.msra.mxu0 %v2239
    %2274 = vmatprep.subr.mxu0 0.0
    %2275 = vmatpush1.msra.mxu0 %v2240
    %2276 = vmatprep.subr.mxu0 0.0
    %2277 = vmatpush1.msra.mxu0 %v2241
    %2278 = vmatprep.subr.mxu0 0.0
    %2279 = vmatpush1.msra.mxu0 %v2242
    %2280 = vmatprep.subr.mxu0 0.0
    %2281 = vmatpush1.msra.mxu0 %v2243
    %2282 = vmatprep.subr.mxu0 0.0
    %2283 = vmatpush1.msra.mxu0 %v2244
    %2284 = vmatprep.subr.mxu0 0.0
    %2285 = vmatpush1.msra.mxu0 0.0
    %2286 = vmatprep.subr.mxu0 0.0
    %2287 = vmatpush1.msra.mxu0 0.0
    %2288 = vmatprep.subr.mxu0 0.0
    %2289 = vmatpush1.msra.mxu0 0.0
    %2290 = vmatprep.subr.mxu0 0.0
    %2291 = vmatpush1.msra.mxu0 0.0
    %2292 = vmatprep.subr.mxu0 0.0
    %2293 = vmatpush1.msra.mxu0 0.0
    %2294 = vmatprep.subr.mxu0 0.0
    %2295 = vmatpush1.msra.mxu0 0.0
    %2296 = vmatprep.subr.mxu0 0.0
    %2297 = vmatpush1.msra.mxu0 0.0
    %2298 = vmatprep.subr.mxu0 0.0
    %2299 = vmatpush1.msra.mxu0 0.0
    %2300 = vmatprep.subr.mxu0 0.0
    %2301 = vmatpush1.msra.mxu0 0.0
    %2302 = vmatprep.subr.mxu0 0.0
    %2303 = vmatpush1.msra.mxu0 0.0
    %2304 = vmatprep.subr.mxu0 0.0
    %2305 = vmatpush1.msra.mxu0 0.0
    %2306 = vmatprep.subr.mxu0 0.0
    %2307 = vmatpush1.msra.mxu0 0.0
    %2308 = vmatprep.subr.mxu0 0.0
    %2309 = vmatpush1.msra.mxu0 0.0
    %2310 = vmatprep.subr.mxu0 0.0
    %2311 = vmatpush1.msra.mxu0 0.0
    %2312 = vmatprep.subr.mxu0 0.0
    %2313 = vmatpush1.msra.mxu0 0.0
    %2314 = vmatprep.subr.mxu0 0.0
    %2315 = vmatpush1.msra.mxu0 0.0
    %2316 = vmatprep.mubr.f32.mxu0 0.0
    %2317 = vmatmul.mubr.f32.gmra.mrb[0].mxu0 %v2228
    %v2318 = vpop.f32.mrb[0].mxu0
    %v2319 = vadd.f32 %v2250, %v2318
    %v2320 = vpop.f32.mrb[0].mxu0
    %2321 = vdwg.mxu0
    %2322 = vst [vmem:[#allocation18] sm:$0x3] %v2319
    // Predicated region
    $region94: #{tpu_custom_call.1} parent=1 // pred_check
      _
    $region95: #{tpu_custom_call.1} parent=1 // pred_check_branch
      %2324 = sbr.rel (0) target = $region97
    $region96: #{tpu_custom_call.1} parent=1 // pred_region
      %s2326 = ssub.s32 32, 32
      %2327 = vsyncadd [#allocation6], %s2326
      %s2329 = sshll.u32 [#allocation18], 4
      %s2330 = int_to_ptr.vmem [resolvable:$true] %s2329
      %2332 = dma.vmem_to_hbm [thread:$0]  %s2330, 32, %s15, [#allocation6]
    $region97: #{tpu_custom_call.1} parent=1 // pred_fallthru
      _
    // Predicated region
    $region98: #{tpu_custom_call.1} parent=1 // pred_check
      _
    $region99: #{tpu_custom_call.1} parent=1 // pred_check_branch
      %2334 = sbr.rel (0) target = $region101
    $region100: #{tpu_custom_call.1} parent=1 // pred_region
      %2335 = dma.done [#allocation6], 32
    $region101: #{tpu_custom_call.1} parent=1 // pred_fallthru
      _
    %2336 = vsyncpa [#allocation5], 1
    %2337 = vsyncpa [#allocation8], 1
    %2338 = vsyncpa [#allocation11], 1
    %2339 = vsyncpa [#allocation14], 1
    %2340 = vsyncpa [#allocation17], 1
    %2341 = vsyncpa [#allocation6], 1

</llo_original>
